<compile_context>
chip_gen: v6e
topology: v6e:2x2x1
jax: 0.10.0
libtpu: 0.0.40
codegen_flags: <defaults>
</compile_context>

<pallas_src>
import jax
import jax.numpy as jnp
from jax.experimental import pallas as pl
from jax.experimental.pallas import tpu as pltpu


def _round_up(n, m):
    return ((n + m - 1) // m) * m


def _mlp_softmax_kernel(x_ref, w1_ref, b1_ref, w2_ref, b2_ref, w3_ref, b3_ref, o_ref):
    # x arrives f32 straight from HBM; cast to bf16 in-kernel (VPU filler under MXU).
    x = x_ref[...].astype(jnp.bfloat16)
    # Layer 1: bf16 MXU operands, f32 accumulate; bias + ReLU in f32.
    h1 = jnp.dot(x, w1_ref[...], preferred_element_type=jnp.float32)
    h1 = jnp.maximum(h1 + b1_ref[...], 0.0)
    # Layer 2
    h2 = jnp.dot(h1.astype(jnp.bfloat16), w2_ref[...], preferred_element_type=jnp.float32)
    h2 = jnp.maximum(h2 + b2_ref[...], 0.0)
    # Layer 3 (padded class columns carry a -1e30 f32 bias -> softmax exact 0 there).
    logits = jnp.dot(h2.astype(jnp.bfloat16), w3_ref[...],
                     preferred_element_type=jnp.float32) + b3_ref[...]
    # Numerically stable softmax over the class axis; exact reciprocal on the EUP slot.
    m = jnp.max(logits, axis=1, keepdims=True)
    e = jnp.exp(logits - m)
    s = jnp.sum(e, axis=1, keepdims=True)
    o_ref[...] = e * pl.reciprocal(s, approx=False)


def init_params(key, input_dim=600, hidden_dim1=512, hidden_dim2=256, output_dim=61):
    # Deterministic init mimicking nn.Linear's uniform(-1/sqrt(fan_in), 1/sqrt(fan_in)).
    # Weights stored [in_dim, out_dim] so the kernel computes x @ W + b.
    ks = jax.random.split(key, 6)

    def lin(kw, kb, fan_in, fan_out):
        bound = 1.0 / jnp.sqrt(jnp.float32(fan_in))
        w = jax.random.uniform(kw, (fan_in, fan_out), jnp.float32, -bound, bound)
        b = jax.random.uniform(kb, (fan_out,), jnp.float32, -bound, bound)
        return w, b

    w1, b1 = lin(ks[0], ks[1], input_dim, hidden_dim1)
    w2, b2 = lin(ks[2], ks[3], hidden_dim1, hidden_dim2)
    w3, b3 = lin(ks[4], ks[5], hidden_dim2, output_dim)
    return (w1, b1, w2, b2, w3, b3)


def prepare_params(params):
    """One-time (model-load) padding + bf16 cast of weights; biases stay f32."""
    w1, b1, w2, b2, w3, b3 = params
    output_dim = w3.shape[1]
    out_pad = _round_up(output_dim, 128)  # 61 -> 128 (lane-dense output; do NOT go wider)

    w1p = w1.astype(jnp.bfloat16)                                     # (600, 512), K unpadded
    w2p = w2.astype(jnp.bfloat16)                                     # (512, 256)
    w3p = jnp.pad(w3, ((0, 0), (0, out_pad - output_dim))).astype(jnp.bfloat16)  # (256, 128)

    b1p = b1.reshape(1, -1).astype(jnp.float32)
    b2p = b2.reshape(1, -1).astype(jnp.float32)
    # Padded class columns get a huge negative bias (must stay f32) -> softmax 0 there.
    b3p = jnp.full((1, out_pad), -1e30, jnp.float32).at[0, :output_dim].set(b3.reshape(-1))
    return (w1p, b1p, w2p, b2p, w3p, b3p), output_dim


def dependency_parser_forward(x, prepared, output_dim, *, block_m=256, slice_output=True):
    """x: [batch, 600] f32. Returns softmax probs [batch, output_dim] f32
    (or [batch, 128] padded-with-zeros layout if slice_output=False)."""
    w1p, b1p, w2p, b2p, w3p, b3p = prepared
    batch, input_dim = x.shape
    h1 = w1p.shape[1]
    h2 = w2p.shape[1]
    out_pad = w3p.shape[1]

    # Row tile: VMEM is not the constraint (~2-4 MiB footprint), grid overhead is.
    # Keep >= 2 grid steps when the batch allows so v7x's two TensorCores both get work.
    bm = min(block_m, _round_up(batch, 8))
    if pl.cdiv(batch, bm) < 2 and batch >= 16:
        bm = _round_up(pl.cdiv(batch, 2), 8)
    grid_m = pl.cdiv(batch, bm)

    # Weights/biases: constant index_map -> fetched once, VMEM-resident across all tiles.
    const = lambda a: pl.BlockSpec(a.shape, lambda i: (0, 0))

    flops = 2 * batch * (input_dim * h1 + h1 * h2 + h2 * out_pad)
    transcendentals = batch * out_pad
    bytes_accessed = int(
        x.size * x.dtype.itemsize
        + sum(int(a.size) * a.dtype.itemsize for a in (w1p, b1p, w2p, b2p, w3p, b3p))
        + batch * out_pad * 4
    )

    out = pl.pallas_call(
        _mlp_softmax_kernel,
        out_shape=jax.ShapeDtypeStruct((batch, out_pad), jnp.float32),
        grid=(grid_m,),
        in_specs=[
            # x tile in f32, full-array last dim (600): no wrapper pad/cast pass needed.
            pl.BlockSpec((bm, input_dim), lambda i: (i, 0)),
            const(w1p), const(b1p),
            const(w2p), const(b2p),
            const(w3p), const(b3p),
        ],
        out_specs=pl.BlockSpec((bm, out_pad), lambda i: (i, 0)),
        compiler_params=pltpu.CompilerParams(dimension_semantics=("parallel",)),
        cost_estimate=pl.CostEstimate(flops=flops,
                                      transcendentals=transcendentals,
                                      bytes_accessed=bytes_accessed),
    )(x, w1p, b1p, w2p, b2p, w3p, b3p)

    if slice_output:
        # Columns 61..127 are exact zeros; consumers that tolerate the padded layout
        # can pass slice_output=False to skip this extra HLO pass.
        return out[:, :output_dim]
    return out


def _reference_forward(x, params):
    """Pure-JAX f32 reference matching the PyTorch module."""
    w1, b1, w2, b2, w3, b3 = params
    a1 = jnp.maximum(x @ w1 + b1, 0.0)
    a2 = jnp.maximum(a1 @ w2 + b2, 0.0)
    return jax.nn.softmax(a2 @ w3 + b3, axis=1)


if __name__ == "__main__":
    key = jax.random.PRNGKey(0)
    k_x, k_p = jax.random.split(key)

    batch = 16
    input_dim, hidden_dim1, hidden_dim2, output_dim = 600, 512, 256, 61

    x = jax.random.normal(k_x, (batch, input_dim), dtype=jnp.float32)
    params = init_params(k_p, input_dim, hidden_dim1, hidden_dim2, output_dim)
    prepared, out_dim = prepare_params(params)

    out = dependency_parser_forward(x, prepared, out_dim)
    out = jax.block_until_ready(out)

    # Sanity: shape, softmax rows sum to ~1, matches f32 reference within bf16 tolerance.
    assert out.shape == (batch, output_dim)
    assert jnp.allclose(jnp.sum(out, axis=1), 1.0, atol=1e-2)
    ref = _reference_forward(x, params)
    assert jnp.max(jnp.abs(out - ref)) < 2e-2

    print("KERNEL_OK")
</pallas_src>

<mosaic_0001>
module attributes {stable_mosaic.version = 11 : i64} {
  func.func @_mlp_softmax_kernel(%arg0: i32, %arg1: memref<8x600xf32, #tpu.memory_space<vmem>>, %arg2: memref<600x512xbf16, #tpu.memory_space<vmem>>, %arg3: memref<1x512xf32, #tpu.memory_space<vmem>>, %arg4: memref<512x256xbf16, #tpu.memory_space<vmem>>, %arg5: memref<1x256xf32, #tpu.memory_space<vmem>>, %arg6: memref<256x128xbf16, #tpu.memory_space<vmem>>, %arg7: memref<1x128xf32, #tpu.memory_space<vmem>>, %arg8: memref<8x128xf32, #tpu.memory_space<vmem>>) attributes {dimension_semantics = [#tpu.dimension_semantics<parallel>], iteration_bounds = array<i64: 2>, scalar_prefetch = 0 : i64, scratch_operands = 0 : i64, tpu.core_type = #tpu.core_type<tc>, window_params = [{transform_indices = @transform_0, window_bounds = array<i64: 8, 600>}, {pipeline_mode = #tpu.pipeline_mode<synchronous>, transform_indices = @transform_1, window_bounds = array<i64: 600, 512>}, {pipeline_mode = #tpu.pipeline_mode<synchronous>, transform_indices = @transform_2, window_bounds = array<i64: 1, 512>}, {pipeline_mode = #tpu.pipeline_mode<synchronous>, transform_indices = @transform_3, window_bounds = array<i64: 512, 256>}, {pipeline_mode = #tpu.pipeline_mode<synchronous>, transform_indices = @transform_4, window_bounds = array<i64: 1, 256>}, {pipeline_mode = #tpu.pipeline_mode<synchronous>, transform_indices = @transform_5, window_bounds = array<i64: 256, 128>}, {pipeline_mode = #tpu.pipeline_mode<synchronous>, transform_indices = @transform_6, window_bounds = array<i64: 1, 128>}, {transform_indices = @transform_7, window_bounds = array<i64: 8, 128>}]} {
    %c0 = arith.constant 0 : index
    %c0_0 = arith.constant 0 : index
    %0 = vector.load %arg1[%c0, %c0_0] : memref<8x600xf32, #tpu.memory_space<vmem>>, vector<8x600xf32>
    %1 = arith.truncf %0 : vector<8x600xf32> to vector<8x600xbf16>
    %c0_1 = arith.constant 0 : index
    %c0_2 = arith.constant 0 : index
    %2 = vector.load %arg2[%c0_1, %c0_2] : memref<600x512xbf16, #tpu.memory_space<vmem>>, vector<600x512xbf16>
    %cst = arith.constant dense<0.000000e+00> : vector<8x512xf32>
    %3 = tpu.matmul %1, %2, %cst {dimension_numbers = #tpu.dot_dimension_numbers<[1], [0], [0], [1], [0, 0, 1, 1], [], []>} : vector<8x600xbf16>, vector<600x512xbf16>, vector<8x512xf32> -> vector<8x512xf32>
    %c0_3 = arith.constant 0 : index
    %c0_4 = arith.constant 0 : index
    %4 = vector.load %arg3[%c0_3, %c0_4] : memref<1x512xf32, #tpu.memory_space<vmem>>, vector<1x512xf32>
    %5 = vector.broadcast %4 : vector<1x512xf32> to vector<8x512xf32>
    %6 = arith.addf %3, %5 : vector<8x512xf32>
    %cst_5 = arith.constant 0.000000e+00 : f32
    %7 = vector.broadcast %cst_5 : f32 to vector<8x512xf32>
    %8 = arith.maximumf %6, %7 : vector<8x512xf32>
    %9 = arith.truncf %8 : vector<8x512xf32> to vector<8x512xbf16>
    %c0_6 = arith.constant 0 : index
    %c0_7 = arith.constant 0 : index
    %10 = vector.load %arg4[%c0_6, %c0_7] : memref<512x256xbf16, #tpu.memory_space<vmem>>, vector<512x256xbf16>
    %cst_8 = arith.constant dense<0.000000e+00> : vector<8x256xf32>
    %11 = tpu.matmul %9, %10, %cst_8 {dimension_numbers = #tpu.dot_dimension_numbers<[1], [0], [0], [1], [0, 0, 1, 1], [], []>} : vector<8x512xbf16>, vector<512x256xbf16>, vector<8x256xf32> -> vector<8x256xf32>
    %c0_9 = arith.constant 0 : index
    %c0_10 = arith.constant 0 : index
    %12 = vector.load %arg5[%c0_9, %c0_10] : memref<1x256xf32, #tpu.memory_space<vmem>>, vector<1x256xf32>
    %13 = vector.broadcast %12 : vector<1x256xf32> to vector<8x256xf32>
    %14 = arith.addf %11, %13 : vector<8x256xf32>
    %cst_11 = arith.constant 0.000000e+00 : f32
    %15 = vector.broadcast %cst_11 : f32 to vector<8x256xf32>
    %16 = arith.maximumf %14, %15 : vector<8x256xf32>
    %17 = arith.truncf %16 : vector<8x256xf32> to vector<8x256xbf16>
    %c0_12 = arith.constant 0 : index
    %c0_13 = arith.constant 0 : index
    %18 = vector.load %arg6[%c0_12, %c0_13] : memref<256x128xbf16, #tpu.memory_space<vmem>>, vector<256x128xbf16>
    %cst_14 = arith.constant dense<0.000000e+00> : vector<8x128xf32>
    %19 = tpu.matmul %17, %18, %cst_14 {dimension_numbers = #tpu.dot_dimension_numbers<[1], [0], [0], [1], [0, 0, 1, 1], [], []>} : vector<8x256xbf16>, vector<256x128xbf16>, vector<8x128xf32> -> vector<8x128xf32>
    %c0_15 = arith.constant 0 : index
    %c0_16 = arith.constant 0 : index
    %20 = vector.load %arg7[%c0_15, %c0_16] : memref<1x128xf32, #tpu.memory_space<vmem>>, vector<1x128xf32>
    %21 = vector.broadcast %20 : vector<1x128xf32> to vector<8x128xf32>
    %22 = arith.addf %19, %21 : vector<8x128xf32>
    %cst_17 = arith.constant dense<0xFF800000> : vector<8xf32>
    %23 = vector.multi_reduction <maximumf>, %22, %cst_17 [1] : vector<8x128xf32> to vector<8xf32>
    %24 = vector.shape_cast %23 : vector<8xf32> to vector<8x1xf32>
    %25 = vector.broadcast %24 : vector<8x1xf32> to vector<8x128xf32>
    %26 = arith.subf %22, %25 : vector<8x128xf32>
    %27 = math.exp %26 : vector<8x128xf32>
    %cst_18 = arith.constant dense<0.000000e+00> : vector<8xf32>
    %28 = vector.multi_reduction <add>, %27, %cst_18 [1] : vector<8x128xf32> to vector<8xf32>
    %29 = vector.shape_cast %28 : vector<8xf32> to vector<8x1xf32>
    %30 = tpu.reciprocal %29 : vector<8x1xf32> -> vector<8x1xf32>
    %31 = vector.broadcast %30 : vector<8x1xf32> to vector<8x128xf32>
    %32 = arith.mulf %27, %31 : vector<8x128xf32>
    %c0_19 = arith.constant 0 : index
    %c0_20 = arith.constant 0 : index
    %33 = vector.load %arg8[%c0_19, %c0_20] : memref<8x128xf32, #tpu.memory_space<vmem>>, vector<8x128xf32>
    tpu.vector_store %arg8[%c0_19, %c0_20], %32 {strides = array<i32>} : memref<8x128xf32, #tpu.memory_space<vmem>>, vector<8x128xf32>,
    return
  }
  func.func @transform_0(%arg0: i32) -> (i32, i32) {
    %c0_i32 = arith.constant 0 : i32
    %c0_i32_0 = arith.constant 0 : i32
    return %arg0, %c0_i32 : i32, i32
  }
  func.func @transform_1(%arg0: i32) -> (i32, i32) {
    %c0_i32 = arith.constant 0 : i32
    %c0_i32_0 = arith.constant 0 : i32
    %c0_i32_1 = arith.constant 0 : i32
    return %c0_i32, %c0_i32_0 : i32, i32
  }
  func.func @transform_2(%arg0: i32) -> (i32, i32) {
    %c0_i32 = arith.constant 0 : i32
    %c0_i32_0 = arith.constant 0 : i32
    %c0_i32_1 = arith.constant 0 : i32
    return %c0_i32, %c0_i32_0 : i32, i32
  }
  func.func @transform_3(%arg0: i32) -> (i32, i32) {
    %c0_i32 = arith.constant 0 : i32
    %c0_i32_0 = arith.constant 0 : i32
    %c0_i32_1 = arith.constant 0 : i32
    return %c0_i32, %c0_i32_0 : i32, i32
  }
  func.func @transform_4(%arg0: i32) -> (i32, i32) {
    %c0_i32 = arith.constant 0 : i32
    %c0_i32_0 = arith.constant 0 : i32
    %c0_i32_1 = arith.constant 0 : i32
    return %c0_i32, %c0_i32_0 : i32, i32
  }
  func.func @transform_5(%arg0: i32) -> (i32, i32) {
    %c0_i32 = arith.constant 0 : i32
    %c0_i32_0 = arith.constant 0 : i32
    %c0_i32_1 = arith.constant 0 : i32
    return %c0_i32, %c0_i32_0 : i32, i32
  }
  func.func @transform_6(%arg0: i32) -> (i32, i32) {
    %c0_i32 = arith.constant 0 : i32
    %c0_i32_0 = arith.constant 0 : i32
    %c0_i32_1 = arith.constant 0 : i32
    return %c0_i32, %c0_i32_0 : i32, i32
  }
  func.func @transform_7(%arg0: i32) -> (i32, i32) {
    %c0_i32 = arith.constant 0 : i32
    %c0_i32_0 = arith.constant 0 : i32
    return %arg0, %c0_i32 : i32, i32
  }
}

</mosaic_0001>

<llo_original>
// kernel: tpu_custom_call.1
$region0: #{tpu_custom_call.1}
  #allocation0 [shape = 'u32[]', space=smem, size = 0x4, offset = 0x4, fixed_abs, tag = 'smem constant byte address 0x4 - core index']
  #allocation1 [shape = 'u32[144,128]{1,0:T(1,128)}', space=vmem, size = 0x12000, scoped, tag = 'internal scratch']
  %s0 = inlined_call_operand.hbm [shape: f32[16,600], index: 0, kind: input, shape index: {}]
  %s1 = inlined_call_operand.hbm [shape: bf16[600,512], index: 1, kind: input, shape index: {}]
  %s2 = inlined_call_operand.hbm [shape: f32[1,512], index: 2, kind: input, shape index: {}]
  %s3 = inlined_call_operand.hbm [shape: bf16[512,256], index: 3, kind: input, shape index: {}]
  %s4 = inlined_call_operand.vmem [shape: f32[1,256], index: 4, kind: input, shape index: {}]
  %s5 = inlined_call_operand.hbm [shape: bf16[256,128], index: 5, kind: input, shape index: {}]
  %s6 = inlined_call_operand.vmem [shape: f32[1,128], index: 6, kind: input, shape index: {}]
  %s7 = inlined_call_operand.hbm [shape: f32[16,128], index: 7, kind: output, shape index: {}]
  %s8 = sld [smem:[#allocation0]]
  $region81: #{tpu_custom_call.1} parent=0
    _
  %s10 = ssub.s32 1, %s8
  %s11 = scalar_select 0, %s10, %s8
  $region1: #{tpu_custom_call.1} parent=0
    #allocation2 [shape = 'u8[40960]{0}', space=vmem, size = 0xa000, scoped, tag = 'input window, operand 0']
    #allocation3 [shape = 's32[2]{0}', space=sflag, size = 0x8, scoped, tag = 'scoped memory for tpu_custom_call.1']
    #allocation4 [shape = 's32[2]{0}', space=sflag, size = 0x8, scoped, tag = 'scoped memory for tpu_custom_call.1']
    #allocation5 [shape = 'u8[614400]{0}', space=vmem, size = 0x96000, scoped, tag = 'input window, operand 1, single buffered']
    #allocation6 [shape = 's32[1]{0}', space=sflag, size = 0x4, scoped, tag = 'scoped memory for tpu_custom_call.1']
    #allocation7 [shape = 'u8[2048]{0}', space=vmem, size = 0x800, scoped, tag = 'input window, operand 2, single buffered']
    #allocation8 [shape = 'u8[262144]{0}', space=vmem, size = 0x40000, scoped, tag = 'input window, operand 3, single buffered']
    #allocation9 [shape = 's32[1]{0}', space=sflag, size = 0x4, scoped, tag = 'scoped memory for tpu_custom_call.1']
    #allocation10 [shape = 'u8[65536]{0}', space=vmem, size = 0x10000, scoped, tag = 'input window, operand 5, single buffered']
    #allocation11 [shape = 'u8[8192]{0}', space=vmem, size = 0x2000, scoped, tag = 'output window, operand 0']
    %12 = vsyncpa [#allocation3], 0
    %s13 = scalar_lea.sflag [#allocation3], 1
    %14 = vsyncpa %s13, 0
    %15 = vsyncpa [#allocation6], 0
    %16 = vsyncpa [#allocation9], 0
    %17 = vsyncpa [#allocation4], 0
    %s18 = scalar_lea.sflag [#allocation4], 1
    %19 = vsyncpa %s18, 0
    loop: start=0, step=1, limit=4
    $region2: #{tpu_custom_call.1} parent=1 // loop_pre_header
      _
    $region3: #{tpu_custom_call.1} parent=1 // loop_header
      %s21 = sphi 0, %s25
      %p22 = scmp.ge.s32.totalorder %s21, 4
      %s31 = sphi 0, %s33
      %s34 = sphi 0, %s31
      %s35 = sphi 0, %s34
      %s51 = sphi 0, %s35
      %s55 = sphi 0, %s55
      %s57 = sphi 0, %s55
      %s58 = sphi 0, %s57
      %s72 = sphi 0, %s58
      %s76 = sphi 0, %s76
      %s78 = sphi 0, %s76
      %s79 = sphi 0, %s78
      %s93 = sphi 0, %s79
      %s97 = sphi 0, %s97
      %s99 = sphi 0, %s97
      %s100 = sphi 0, %s99
      %s114 = sphi 0, %s100
      %s118 = sphi 0, %s118
      %s120 = sphi 0, %s118
      %s121 = sphi 0, %s120
      %s135 = sphi 0, %s121
      %s139 = sphi 0, %s139
      %s141 = sphi 0, %s139
      %s142 = sphi 0, %s141
      %s156 = sphi 0, %s142
      %s160 = sphi 0, %s160
      %s162 = sphi 0, %s160
      %s163 = sphi 0, %s162
      %s177 = sphi 0, %s163
      %s183 = sphi 0, %s185
      %s186 = sphi 0, %s183
      %s187 = sphi 0, %s186
      %s203 = sphi 0, %s187
    $region4: #{tpu_custom_call.1} parent=1 // loop_header_branch
      %24 = sbr.rel (%p22) target = $region8
    $region5: #{tpu_custom_call.1} parent=1 // loop_body
      %s26 = ssub.s32 %s21, 1
      %s27 = ssub.s32 %s21, 2
      %s28 = sadd.s32 %s21, 1
      %s29 = ssub.s32 %s21, %s28
      %p30 = scmp.eq.s32.totalorder %s29, 0
      %s32 = sadd.s32 %s31, 1
      %s33 = scalar_select %p30, %s31, %s32
      %p36 = pneg %p30
      %p37 = scmp.eq.s32.totalorder %s21, 1
      %p38 = por %p36, %p37
      %p39 = scmp.ne.s32.totalorder %s31, %s34
      %p40 = scmp.eq.s32.totalorder %s21, 0
      %p41 = por %p39, %p40
      %p42 = scmp.ne.s32.totalorder %s31, %s34
      %p43 = scmp.eq.s32.totalorder %s26, 1
      %p44 = por %p42, %p43
      %p45 = scmp.ne.s32.totalorder %s34, %s35
      %p46 = scmp.eq.s32.totalorder %s26, 0
      %p47 = por %p45, %p46
      %p48 = scmp.ne.s32.totalorder %s34, %s35
      %p49 = scmp.eq.s32.totalorder %s27, 1
      %p50 = por %p48, %p49
      %p52 = scmp.ne.s32.totalorder %s35, %s51
      %p53 = scmp.eq.s32.totalorder %s27, 0
      %p54 = por %p52, %p53
      %s56 = sadd.s32 %s55, 1
      %p59 = scmp.eq.s32.totalorder %s21, 1
      %p60 = scmp.ne.s32.totalorder %s55, %s57
      %p61 = scmp.eq.s32.totalorder %s21, 0
      %p62 = por %p60, %p61
      %p63 = scmp.ne.s32.totalorder %s55, %s57
      %p64 = scmp.eq.s32.totalorder %s26, 1
      %p65 = por %p63, %p64
      %p66 = scmp.ne.s32.totalorder %s57, %s58
      %p67 = scmp.eq.s32.totalorder %s26, 0
      %p68 = por %p66, %p67
      %p69 = scmp.ne.s32.totalorder %s57, %s58
      %p70 = scmp.eq.s32.totalorder %s27, 1
      %p71 = por %p69, %p70
      %p73 = scmp.ne.s32.totalorder %s58, %s72
      %p74 = scmp.eq.s32.totalorder %s27, 0
      %p75 = por %p73, %p74
      %s77 = sadd.s32 %s76, 1
      %p80 = scmp.eq.s32.totalorder %s21, 1
      %p81 = scmp.ne.s32.totalorder %s76, %s78
      %p82 = scmp.eq.s32.totalorder %s21, 0
      %p83 = por %p81, %p82
      %p84 = scmp.ne.s32.totalorder %s76, %s78
      %p85 = scmp.eq.s32.totalorder %s26, 1
      %p86 = por %p84, %p85
      %p87 = scmp.ne.s32.totalorder %s78, %s79
      %p88 = scmp.eq.s32.totalorder %s26, 0
      %p89 = por %p87, %p88
      %p90 = scmp.ne.s32.totalorder %s78, %s79
      %p91 = scmp.eq.s32.totalorder %s27, 1
      %p92 = por %p90, %p91
      %p94 = scmp.ne.s32.totalorder %s79, %s93
      %p95 = scmp.eq.s32.totalorder %s27, 0
      %p96 = por %p94, %p95
      %s98 = sadd.s32 %s97, 1
      %p101 = scmp.eq.s32.totalorder %s21, 1
      %p102 = scmp.ne.s32.totalorder %s97, %s99
      %p103 = scmp.eq.s32.totalorder %s21, 0
      %p104 = por %p102, %p103
      %p105 = scmp.ne.s32.totalorder %s97, %s99
      %p106 = scmp.eq.s32.totalorder %s26, 1
      %p107 = por %p105, %p106
      %p108 = scmp.ne.s32.totalorder %s99, %s100
      %p109 = scmp.eq.s32.totalorder %s26, 0
      %p110 = por %p108, %p109
      %p111 = scmp.ne.s32.totalorder %s99, %s100
      %p112 = scmp.eq.s32.totalorder %s27, 1
      %p113 = por %p111, %p112
      %p115 = scmp.ne.s32.totalorder %s100, %s114
      %p116 = scmp.eq.s32.totalorder %s27, 0
      %p117 = por %p115, %p116
      %s119 = sadd.s32 %s118, 1
      %p122 = scmp.eq.s32.totalorder %s21, 1
      %p123 = scmp.ne.s32.totalorder %s118, %s120
      %p124 = scmp.eq.s32.totalorder %s21, 0
      %p125 = por %p123, %p124
      %p126 = scmp.ne.s32.totalorder %s118, %s120
      %p127 = scmp.eq.s32.totalorder %s26, 1
      %p128 = por %p126, %p127
      %p129 = scmp.ne.s32.totalorder %s120, %s121
      %p130 = scmp.eq.s32.totalorder %s26, 0
      %p131 = por %p129, %p130
      %p132 = scmp.ne.s32.totalorder %s120, %s121
      %p133 = scmp.eq.s32.totalorder %s27, 1
      %p134 = por %p132, %p133
      %p136 = scmp.ne.s32.totalorder %s121, %s135
      %p137 = scmp.eq.s32.totalorder %s27, 0
      %p138 = por %p136, %p137
      %s140 = sadd.s32 %s139, 1
      %p143 = scmp.eq.s32.totalorder %s21, 1
      %p144 = scmp.ne.s32.totalorder %s139, %s141
      %p145 = scmp.eq.s32.totalorder %s21, 0
      %p146 = por %p144, %p145
      %p147 = scmp.ne.s32.totalorder %s139, %s141
      %p148 = scmp.eq.s32.totalorder %s26, 1
      %p149 = por %p147, %p148
      %p150 = scmp.ne.s32.totalorder %s141, %s142
      %p151 = scmp.eq.s32.totalorder %s26, 0
      %p152 = por %p150, %p151
      %p153 = scmp.ne.s32.totalorder %s141, %s142
      %p154 = scmp.eq.s32.totalorder %s27, 1
      %p155 = por %p153, %p154
      %p157 = scmp.ne.s32.totalorder %s142, %s156
      %p158 = scmp.eq.s32.totalorder %s27, 0
      %p159 = por %p157, %p158
      %s161 = sadd.s32 %s160, 1
      %p164 = scmp.eq.s32.totalorder %s21, 1
      %p165 = scmp.ne.s32.totalorder %s160, %s162
      %p166 = scmp.eq.s32.totalorder %s21, 0
      %p167 = por %p165, %p166
      %p168 = scmp.ne.s32.totalorder %s160, %s162
      %p169 = scmp.eq.s32.totalorder %s26, 1
      %p170 = por %p168, %p169
      %p171 = scmp.ne.s32.totalorder %s162, %s163
      %p172 = scmp.eq.s32.totalorder %s26, 0
      %p173 = por %p171, %p172
      %p174 = scmp.ne.s32.totalorder %s162, %s163
      %p175 = scmp.eq.s32.totalorder %s27, 1
      %p176 = por %p174, %p175
      %p178 = scmp.ne.s32.totalorder %s163, %s177
      %p179 = scmp.eq.s32.totalorder %s27, 0
      %p180 = por %p178, %p179
      %s181 = ssub.s32 %s21, %s28
      %p182 = scmp.eq.s32.totalorder %s181, 0
      %s184 = sadd.s32 %s183, 1
      %s185 = scalar_select %p182, %s183, %s184
      %p188 = pneg %p182
      %p189 = scmp.eq.s32.totalorder %s21, 1
      %p190 = por %p188, %p189
      %p191 = scmp.ne.s32.totalorder %s183, %s186
      %p192 = scmp.eq.s32.totalorder %s21, 0
      %p193 = por %p191, %p192
      %p194 = scmp.ne.s32.totalorder %s183, %s186
      %p195 = scmp.eq.s32.totalorder %s26, 1
      %p196 = por %p194, %p195
      %p197 = scmp.ne.s32.totalorder %s186, %s187
      %p198 = scmp.eq.s32.totalorder %s26, 0
      %p199 = por %p197, %p198
      %p200 = scmp.ne.s32.totalorder %s186, %s187
      %p201 = scmp.eq.s32.totalorder %s27, 1
      %p202 = por %p200, %p201
      %p204 = scmp.ne.s32.totalorder %s187, %s203
      %p205 = scmp.eq.s32.totalorder %s27, 0
      %p206 = por %p204, %p205
      %p207 = scmp.le.s32.totalorder 1, %s21
      %p208 = scmp.lt.s32.totalorder %s21, 3
      %p209 = pnand %p207, %p208
      %p210 = pneg %p209
      // Predicated region
      $region9: #{tpu_custom_call.1} parent=5 // pred_check
        _
      $region10: #{tpu_custom_call.1} parent=5 // pred_check_branch
        %212 = sbr.rel (%p209) target = $region12
      $region11: #{tpu_custom_call.1} parent=5 // pred_region
        %s213 = ssub.s32 %s21, 1
        // Predicated region
        $region13: #{tpu_custom_call.1} parent=11 // pred_check
          %p214 = pneg %p68
        $region14: #{tpu_custom_call.1} parent=11 // pred_check_branch
          %216 = sbr.rel (%p214) target = $region16
        $region15: #{tpu_custom_call.1} parent=11 // pred_region
          %s218 = ssub.s32 19200, 19200
          %219 = vsyncadd [#allocation6], %s218
          %s220 = sshll.u32 [#allocation5], 4
          %s221 = int_to_ptr.vmem [resolvable:$true] %s220
          %226 = dma.hbm_to_vmem [thread:$0]  %s1, 19200, %s221, [#allocation6], 256, 256, 16
        $region16: #{tpu_custom_call.1} parent=11 // pred_fallthru
          _
        // Predicated region
        $region17: #{tpu_custom_call.1} parent=11 // pred_check
          %p227 = pneg %p89
        $region18: #{tpu_custom_call.1} parent=11 // pred_check_branch
          %229 = sbr.rel (%p227) target = $region20
        $region19: #{tpu_custom_call.1} parent=11 // pred_region
          %s231 = ssub.s32 64, 64
          %232 = vsyncadd [#allocation6], %s231
          %s234 = sshll.u32 [#allocation7], 4
          %s235 = int_to_ptr.vmem [resolvable:$true] %s234
          %237 = dma.hbm_to_vmem [thread:$0]  %s2, 64, %s235, [#allocation6]
        $region20: #{tpu_custom_call.1} parent=11 // pred_fallthru
          _
        // Predicated region
        $region21: #{tpu_custom_call.1} parent=11 // pred_check
          %p238 = pneg %p110
        $region22: #{tpu_custom_call.1} parent=11 // pred_check_branch
          %240 = sbr.rel (%p238) target = $region24
        $region23: #{tpu_custom_call.1} parent=11 // pred_region
          %s242 = ssub.s32 8192, 8192
          %243 = vsyncadd [#allocation9], %s242
          %s244 = sshll.u32 [#allocation8], 4
          %s245 = int_to_ptr.vmem [resolvable:$true] %s244
          %250 = dma.hbm_to_vmem [thread:$0]  %s3, 8192, %s245, [#allocation9], 128, 128, 8
        $region24: #{tpu_custom_call.1} parent=11 // pred_fallthru
          _
        // Predicated region
        $region25: #{tpu_custom_call.1} parent=11 // pred_check
          %p251 = pneg %p131
        $region26: #{tpu_custom_call.1} parent=11 // pred_check_branch
          %253 = sbr.rel (%p251) target = $region28
        $region27: #{tpu_custom_call.1} parent=11 // pred_region
          _
        $region28: #{tpu_custom_call.1} parent=11 // pred_fallthru
          _
        // Predicated region
        $region29: #{tpu_custom_call.1} parent=11 // pred_check
          %p254 = pneg %p152
        $region30: #{tpu_custom_call.1} parent=11 // pred_check_branch
          %256 = sbr.rel (%p254) target = $region32
        $region31: #{tpu_custom_call.1} parent=11 // pred_region
          %s258 = ssub.s32 2048, 2048
          %259 = vsyncadd [#allocation9], %s258
          %s260 = sshll.u32 [#allocation10], 4
          %s261 = int_to_ptr.vmem [resolvable:$true] %s260
          %266 = dma.hbm_to_vmem [thread:$0]  %s5, 2048, %s261, [#allocation9], 64, 64, 4
        $region32: #{tpu_custom_call.1} parent=11 // pred_fallthru
          _
        // Predicated region
        $region33: #{tpu_custom_call.1} parent=11 // pred_check
          %p267 = pneg %p173
        $region34: #{tpu_custom_call.1} parent=11 // pred_check_branch
          %269 = sbr.rel (%p267) target = $region36
        $region35: #{tpu_custom_call.1} parent=11 // pred_region
          _
        $region36: #{tpu_custom_call.1} parent=11 // pred_fallthru
          _
      $region12: #{tpu_custom_call.1} parent=5 // pred_fallthru
        _
      %p270 = scmp.lt.s32.totalorder %s21, 2
      // Predicated region
      $region37: #{tpu_custom_call.1} parent=5 // pred_check
        %p271 = pneg %p270
      $region38: #{tpu_custom_call.1} parent=5 // pred_check_branch
        %273 = sbr.rel (%p271) target = $region40
      $region39: #{tpu_custom_call.1} parent=5 // pred_region
        // Predicated region
        $region41: #{tpu_custom_call.1} parent=39 // pred_check
          %p274 = pneg %p41
        $region42: #{tpu_custom_call.1} parent=39 // pred_check_branch
          %276 = sbr.rel (%p274) target = $region44
        $region43: #{tpu_custom_call.1} parent=39 // pred_region
          %s277 = sand.u32 %s31, 1
          %s278 = scalar_lea.sflag [#allocation3], %s277
          %s279 = sand.u32 %s31, 1
          %s280 = smul.addr %s279, 40
          %s281 = scalar_lea.vmem [#allocation2], %s280
          %s283 = ssub.s32 640, 640
          %284 = vsyncadd %s278, %s283
          %s285 = smul.addr %s21, 5
          %s286 = smul.addr %s285, 128
          %s287 = scalar_lea.hbm %s0, %s286
          %s289 = sshll.u32 %s281, 4
          %s290 = int_to_ptr.vmem [resolvable:$true] %s289
          %292 = dma.hbm_to_vmem [thread:$0]  %s287, 640, %s290, %s278
        $region44: #{tpu_custom_call.1} parent=39 // pred_fallthru
          _
      $region40: #{tpu_custom_call.1} parent=5 // pred_fallthru
        _
      %p293 = scmp.le.s32.totalorder 1, %s21
      %p294 = scmp.lt.s32.totalorder %s21, 3
      %p295 = pnand %p293, %p294
      %p296 = pneg %p295
      // Predicated region
      $region45: #{tpu_custom_call.1} parent=5 // pred_check
        _
      $region46: #{tpu_custom_call.1} parent=5 // pred_check_branch
        %298 = sbr.rel (%p295) target = $region48
      $region47: #{tpu_custom_call.1} parent=5 // pred_region
        %s299 = ssub.s32 %s21, 1
        %s300 = sand.u32 %s34, 1
        %s301 = scalar_lea.sflag [#allocation3], %s300
        %s302 = sand.u32 %s34, 1
        %s303 = smul.addr %s302, 40
        %s304 = scalar_lea.vmem [#allocation2], %s303
        // Predicated region
        $region49: #{tpu_custom_call.1} parent=47 // pred_check
          %p305 = pneg %p47
        $region50: #{tpu_custom_call.1} parent=47 // pred_check_branch
          %307 = sbr.rel (%p305) target = $region52
        $region51: #{tpu_custom_call.1} parent=47 // pred_region
          %308 = dma.done %s301, 640
        $region52: #{tpu_custom_call.1} parent=47 // pred_fallthru
          _
        // Predicated region
        $region53: #{tpu_custom_call.1} parent=47 // pred_check
          %p309 = pneg %p68
        $region54: #{tpu_custom_call.1} parent=47 // pred_check_branch
          %311 = sbr.rel (%p309) target = $region56
        $region55: #{tpu_custom_call.1} parent=47 // pred_region
          %312 = dma.done [#allocation6], 19200
        $region56: #{tpu_custom_call.1} parent=47 // pred_fallthru
          _
        // Predicated region
        $region57: #{tpu_custom_call.1} parent=47 // pred_check
          %p313 = pneg %p89
        $region58: #{tpu_custom_call.1} parent=47 // pred_check_branch
          %315 = sbr.rel (%p313) target = $region60
        $region59: #{tpu_custom_call.1} parent=47 // pred_region
          %316 = dma.done [#allocation6], 64
        $region60: #{tpu_custom_call.1} parent=47 // pred_fallthru
          _
        // Predicated region
        $region61: #{tpu_custom_call.1} parent=47 // pred_check
          %p317 = pneg %p110
        $region62: #{tpu_custom_call.1} parent=47 // pred_check_branch
          %319 = sbr.rel (%p317) target = $region64
        $region63: #{tpu_custom_call.1} parent=47 // pred_region
          %320 = dma.done [#allocation9], 8192
        $region64: #{tpu_custom_call.1} parent=47 // pred_fallthru
          _
        // Predicated region
        $region65: #{tpu_custom_call.1} parent=47 // pred_check
          %p321 = pneg %p152
        $region66: #{tpu_custom_call.1} parent=47 // pred_check_branch
          %323 = sbr.rel (%p321) target = $region68
        $region67: #{tpu_custom_call.1} parent=47 // pred_region
          %324 = dma.done [#allocation9], 2048
        $region68: #{tpu_custom_call.1} parent=47 // pred_fallthru
          _
        %s325 = sand.u32 %s34, 1
        %s326 = scalar_lea.sflag [#allocation3], %s325
        %s327 = sand.u32 %s34, 1
        %s328 = smul.addr %s327, 40
        %s329 = scalar_lea.vmem [#allocation2], %s328
        %p330 = pneg %p47
        %p331 = pneg %p44
        %p332 = pneg %p68
        %p333 = pneg %p65
        %p334 = pneg %p89
        %p335 = pneg %p86
        %p336 = pneg %p110
        %p337 = pneg %p107
        %p338 = pneg %p131
        %p339 = pneg %p128
        %p340 = pneg %p152
        %p341 = pneg %p149
        %p342 = pneg %p173
        %p343 = pneg %p170
        %p344 = pneg %p199
        %p345 = pneg %p196
        %s346 = sand.u32 %s186, 1
        %s347 = scalar_lea.sflag [#allocation4], %s346
        %s348 = sand.u32 %s186, 1
        %s349 = smul.addr %s348, 8
        %s350 = scalar_lea.vmem [#allocation11], %s349
        %v352 = vld [vmem:[%s304] sm:$0xff]
        %v353 = vld [vmem:[%s304 + $0x8] sm:$0xff]
        %v354 = vld [vmem:[%s304 + $0x10] sm:$0xff]
        %v355 = vld [vmem:[%s304 + $0x18] sm:$0xff]
        %v356 = vld [vmem:[%s304 + $0x20] sm:$0xff]
        %v357 = vpack.c.bf16 %v352, %v352
        %v358 = vpack.c.bf16 %v353, %v353
        %v359 = vpack.c.bf16 %v354, %v354
        %v360 = vpack.c.bf16 %v355, %v355
        %v361 = vpack.c.bf16 %v356, %v356
        %v362 = vld [vmem:[#allocation5] sm:$0xff]
        %v363 = vld [vmem:[#allocation5 + $0x8] sm:$0xff]
        %v364 = vld [vmem:[#allocation5 + $0x10] sm:$0xff]
        %v365 = vld [vmem:[#allocation5 + $0x18] sm:$0xff]
        %v366 = vld [vmem:[#allocation5 + $0x20] sm:$0xff]
        %v367 = vld [vmem:[#allocation5 + $0x28] sm:$0xff]
        %v368 = vld [vmem:[#allocation5 + $0x30] sm:$0xff]
        %v369 = vld [vmem:[#allocation5 + $0x38] sm:$0xff]
        %v370 = vld [vmem:[#allocation5 + $0x40] sm:$0xff]
        %v371 = vld [vmem:[#allocation5 + $0x48] sm:$0xff]
        %v372 = vld [vmem:[#allocation5 + $0x50] sm:$0xff]
        %v373 = vld [vmem:[#allocation5 + $0x58] sm:$0xff]
        %v374 = vld [vmem:[#allocation5 + $0x60] sm:$0xff]
        %v375 = vld [vmem:[#allocation5 + $0x68] sm:$0xff]
        %v376 = vld [vmem:[#allocation5 + $0x70] sm:$0xff]
        %v377 = vld [vmem:[#allocation5 + $0x78] sm:$0xff]
        %v378 = vld [vmem:[#allocation5 + $0x80] sm:$0xff]
        %v379 = vld [vmem:[#allocation5 + $0x88] sm:$0xff]
        %v380 = vld [vmem:[#allocation5 + $0x90] sm:$0xff]
        %v381 = vld [vmem:[#allocation5 + $0x98] sm:$0xff]
        %v382 = vld [vmem:[#allocation5 + $0xa0] sm:$0xff]
        %v383 = vld [vmem:[#allocation5 + $0xa8] sm:$0xff]
        %v384 = vld [vmem:[#allocation5 + $0xb0] sm:$0xff]
        %v385 = vld [vmem:[#allocation5 + $0xb8] sm:$0xff]
        %v386 = vld [vmem:[#allocation5 + $0xc0] sm:$0xff]
        %v387 = vld [vmem:[#allocation5 + $0xc8] sm:$0xff]
        %v388 = vld [vmem:[#allocation5 + $0xd0] sm:$0xff]
        %v389 = vld [vmem:[#allocation5 + $0xd8] sm:$0xff]
        %v390 = vld [vmem:[#allocation5 + $0xe0] sm:$0xff]
        %v391 = vld [vmem:[#allocation5 + $0xe8] sm:$0xff]
        %v392 = vld [vmem:[#allocation5 + $0xf0] sm:$0xff]
        %v393 = vld [vmem:[#allocation5 + $0xf8] sm:$0xff]
        %v394 = vld [vmem:[#allocation5 + $0x100] sm:$0xff]
        %v395 = vld [vmem:[#allocation5 + $0x108] sm:$0xff]
        %v396 = vld [vmem:[#allocation5 + $0x110] sm:$0xff]
        %v397 = vld [vmem:[#allocation5 + $0x118] sm:$0xff]
        %v398 = vld [vmem:[#allocation5 + $0x120] sm:$0xff]
        %v399 = vld [vmem:[#allocation5 + $0x128] sm:$0xff]
        %v400 = vld [vmem:[#allocation5 + $0x130] sm:$0xff]
        %v401 = vld [vmem:[#allocation5 + $0x138] sm:$0xff]
        %v402 = vld [vmem:[#allocation5 + $0x140] sm:$0xff]
        %v403 = vld [vmem:[#allocation5 + $0x148] sm:$0xff]
        %v404 = vld [vmem:[#allocation5 + $0x150] sm:$0xff]
        %v405 = vld [vmem:[#allocation5 + $0x158] sm:$0xff]
        %v406 = vld [vmem:[#allocation5 + $0x160] sm:$0xff]
        %v407 = vld [vmem:[#allocation5 + $0x168] sm:$0xff]
        %v408 = vld [vmem:[#allocation5 + $0x170] sm:$0xff]
        %v409 = vld [vmem:[#allocation5 + $0x178] sm:$0xff]
        %v410 = vld [vmem:[#allocation5 + $0x180] sm:$0xff]
        %v411 = vld [vmem:[#allocation5 + $0x188] sm:$0xff]
        %v412 = vld [vmem:[#allocation5 + $0x190] sm:$0xff]
        %v413 = vld [vmem:[#allocation5 + $0x198] sm:$0xff]
        %v414 = vld [vmem:[#allocation5 + $0x1a0] sm:$0xff]
        %v415 = vld [vmem:[#allocation5 + $0x1a8] sm:$0xff]
        %v416 = vld [vmem:[#allocation5 + $0x1b0] sm:$0xff]
        %v417 = vld [vmem:[#allocation5 + $0x1b8] sm:$0xff]
        %v418 = vld [vmem:[#allocation5 + $0x1c0] sm:$0xff]
        %v419 = vld [vmem:[#allocation5 + $0x1c8] sm:$0xff]
        %v420 = vld [vmem:[#allocation5 + $0x1d0] sm:$0xff]
        %v421 = vld [vmem:[#allocation5 + $0x1d8] sm:$0xff]
        %v422 = vld [vmem:[#allocation5 + $0x1e0] sm:$0xff]
        %v423 = vld [vmem:[#allocation5 + $0x1e8] sm:$0xff]
        %v424 = vld [vmem:[#allocation5 + $0x1f0] sm:$0xff]
        %v425 = vld [vmem:[#allocation5 + $0x1f8] sm:$0xff]
        %v426 = vld [vmem:[#allocation5 + $0x200] sm:$0xff]
        %v427 = vld [vmem:[#allocation5 + $0x208] sm:$0xff]
        %v428 = vld [vmem:[#allocation5 + $0x210] sm:$0xff]
        %v429 = vld [vmem:[#allocation5 + $0x218] sm:$0xff]
        %v430 = vld [vmem:[#allocation5 + $0x220] sm:$0xff]
        %v431 = vld [vmem:[#allocation5 + $0x228] sm:$0xff]
        %v432 = vld [vmem:[#allocation5 + $0x230] sm:$0xff]
        %v433 = vld [vmem:[#allocation5 + $0x238] sm:$0xff]
        %v434 = vld [vmem:[#allocation5 + $0x240] sm:$0xff]
        %v435 = vld [vmem:[#allocation5 + $0x248] sm:$0xff]
        %v436 = vld [vmem:[#allocation5 + $0x250] sm:$0xff]
        %v437 = vld [vmem:[#allocation5 + $0x258] sm:$0xff]
        %v438 = vld [vmem:[#allocation5 + $0x260] sm:$0xff]
        %v439 = vld [vmem:[#allocation5 + $0x268] sm:$0xff]
        %v440 = vld [vmem:[#allocation5 + $0x270] sm:$0xff]
        %v441 = vld [vmem:[#allocation5 + $0x278] sm:$0xff]
        %v442 = vld [vmem:[#allocation5 + $0x280] sm:$0xff]
        %v443 = vld [vmem:[#allocation5 + $0x288] sm:$0xff]
        %v444 = vld [vmem:[#allocation5 + $0x290] sm:$0xff]
        %v445 = vld [vmem:[#allocation5 + $0x298] sm:$0xff]
        %v446 = vld [vmem:[#allocation5 + $0x2a0] sm:$0xff]
        %v447 = vld [vmem:[#allocation5 + $0x2a8] sm:$0xff]
        %v448 = vld [vmem:[#allocation5 + $0x2b0] sm:$0xff]
        %v449 = vld [vmem:[#allocation5 + $0x2b8] sm:$0xff]
        %v450 = vld [vmem:[#allocation5 + $0x2c0] sm:$0xff]
        %v451 = vld [vmem:[#allocation5 + $0x2c8] sm:$0xff]
        %v452 = vld [vmem:[#allocation5 + $0x2d0] sm:$0xff]
        %v453 = vld [vmem:[#allocation5 + $0x2d8] sm:$0xff]
        %v454 = vld [vmem:[#allocation5 + $0x2e0] sm:$0xff]
        %v455 = vld [vmem:[#allocation5 + $0x2e8] sm:$0xff]
        %v456 = vld [vmem:[#allocation5 + $0x2f0] sm:$0xff]
        %v457 = vld [vmem:[#allocation5 + $0x2f8] sm:$0xff]
        %v458 = vld [vmem:[#allocation5 + $0x300] sm:$0xff]
        %v459 = vld [vmem:[#allocation5 + $0x308] sm:$0xff]
        %v460 = vld [vmem:[#allocation5 + $0x310] sm:$0xff]
        %v461 = vld [vmem:[#allocation5 + $0x318] sm:$0xff]
        %v462 = vld [vmem:[#allocation5 + $0x320] sm:$0xff]
        %v463 = vld [vmem:[#allocation5 + $0x328] sm:$0xff]
        %v464 = vld [vmem:[#allocation5 + $0x330] sm:$0xff]
        %v465 = vld [vmem:[#allocation5 + $0x338] sm:$0xff]
        %v466 = vld [vmem:[#allocation5 + $0x340] sm:$0xff]
        %v467 = vld [vmem:[#allocation5 + $0x348] sm:$0xff]
        %v468 = vld [vmem:[#allocation5 + $0x350] sm:$0xff]
        %v469 = vld [vmem:[#allocation5 + $0x358] sm:$0xff]
        %v470 = vld [vmem:[#allocation5 + $0x360] sm:$0xff]
        %v471 = vld [vmem:[#allocation5 + $0x368] sm:$0xff]
        %v472 = vld [vmem:[#allocation5 + $0x370] sm:$0xff]
        %v473 = vld [vmem:[#allocation5 + $0x378] sm:$0xff]
        %v474 = vld [vmem:[#allocation5 + $0x380] sm:$0xff]
        %v475 = vld [vmem:[#allocation5 + $0x388] sm:$0xff]
        %v476 = vld [vmem:[#allocation5 + $0x390] sm:$0xff]
        %v477 = vld [vmem:[#allocation5 + $0x398] sm:$0xff]
        %v478 = vld [vmem:[#allocation5 + $0x3a0] sm:$0xff]
        %v479 = vld [vmem:[#allocation5 + $0x3a8] sm:$0xff]
        %v480 = vld [vmem:[#allocation5 + $0x3b0] sm:$0xff]
        %v481 = vld [vmem:[#allocation5 + $0x3b8] sm:$0xff]
        %v482 = vld [vmem:[#allocation5 + $0x3c0] sm:$0xff]
        %v483 = vld [vmem:[#allocation5 + $0x3c8] sm:$0xff]
        %v484 = vld [vmem:[#allocation5 + $0x3d0] sm:$0xff]
        %v485 = vld [vmem:[#allocation5 + $0x3d8] sm:$0xff]
        %v486 = vld [vmem:[#allocation5 + $0x3e0] sm:$0xff]
        %v487 = vld [vmem:[#allocation5 + $0x3e8] sm:$0xff]
        %v488 = vld [vmem:[#allocation5 + $0x3f0] sm:$0xff]
        %v489 = vld [vmem:[#allocation5 + $0x3f8] sm:$0xff]
        %v490 = vld [vmem:[#allocation5 + $0x400] sm:$0xff]
        %v491 = vld [vmem:[#allocation5 + $0x408] sm:$0xff]
        %v492 = vld [vmem:[#allocation5 + $0x410] sm:$0xff]
        %v493 = vld [vmem:[#allocation5 + $0x418] sm:$0xff]
        %v494 = vld [vmem:[#allocation5 + $0x420] sm:$0xff]
        %v495 = vld [vmem:[#allocation5 + $0x428] sm:$0xff]
        %v496 = vld [vmem:[#allocation5 + $0x430] sm:$0xff]
        %v497 = vld [vmem:[#allocation5 + $0x438] sm:$0xff]
        %v498 = vld [vmem:[#allocation5 + $0x440] sm:$0xff]
        %v499 = vld [vmem:[#allocation5 + $0x448] sm:$0xff]
        %v500 = vld [vmem:[#allocation5 + $0x450] sm:$0xff]
        %v501 = vld [vmem:[#allocation5 + $0x458] sm:$0xff]
        %v502 = vld [vmem:[#allocation5 + $0x460] sm:$0xff]
        %v503 = vld [vmem:[#allocation5 + $0x468] sm:$0xff]
        %v504 = vld [vmem:[#allocation5 + $0x470] sm:$0xff]
        %v505 = vld [vmem:[#allocation5 + $0x478] sm:$0xff]
        %v506 = vld [vmem:[#allocation5 + $0x480] sm:$0xff]
        %v507 = vld [vmem:[#allocation5 + $0x488] sm:$0xff]
        %v508 = vld [vmem:[#allocation5 + $0x490] sm:$0xff]
        %v509 = vld [vmem:[#allocation5 + $0x498] sm:$0xff]
        %v510 = vld [vmem:[#allocation5 + $0x4a0] sm:$0xff]
        %v511 = vld [vmem:[#allocation5 + $0x4a8] sm:$0xff]
        %v512 = vld [vmem:[#allocation7] sm:$0xf]
        %v514 = vlaneseq
        %v515 = vshrl.u32 %v514, 7
        %v516 = vsub.s32 0, %v515
        %v517 = vrot.slane %v512, %v516
        %v518 = vlaneseq
        %v519 = vshrl.u32 %v518, 7
        %v520 = vsub.s32 1, %v519
        %v521 = vrot.slane %v512, %v520
        %v522 = vlaneseq
        %v523 = vshrl.u32 %v522, 7
        %v524 = vsub.s32 2, %v523
        %v525 = vrot.slane %v512, %v524
        %v526 = vlaneseq
        %v527 = vshrl.u32 %v526, 7
        %v528 = vsub.s32 3, %v527
        %v529 = vrot.slane %v512, %v528
        %v684 = vunpack.c.l.b16 %v362
        %v685 = vunpack.c.h.b16 %v362
        %v686 = vunpack.c.l.b16 %v363
        %v687 = vunpack.c.h.b16 %v363
        %v688 = vunpack.c.l.b16 %v364
        %v689 = vunpack.c.h.b16 %v364
        %v690 = vunpack.c.l.b16 %v365
        %v691 = vunpack.c.h.b16 %v365
        %v692 = vunpack.c.l.b16 %v366
        %v693 = vunpack.c.h.b16 %v366
        %v694 = vunpack.c.l.b16 %v367
        %v695 = vunpack.c.h.b16 %v367
        %v696 = vunpack.c.l.b16 %v368
        %v697 = vunpack.c.h.b16 %v368
        %v698 = vunpack.c.l.b16 %v369
        %v699 = vunpack.c.h.b16 %v369
        %v700 = vunpack.c.l.b16 %v370
        %v701 = vunpack.c.h.b16 %v370
        %v702 = vunpack.c.l.b16 %v371
        %v703 = vunpack.c.h.b16 %v371
        %v704 = vunpack.c.l.b16 %v372
        %v705 = vunpack.c.h.b16 %v372
        %v706 = vunpack.c.l.b16 %v373
        %v707 = vunpack.c.h.b16 %v373
        %v708 = vunpack.c.l.b16 %v374
        %v709 = vunpack.c.h.b16 %v374
        %v710 = vunpack.c.l.b16 %v375
        %v711 = vunpack.c.h.b16 %v375
        %v712 = vunpack.c.l.b16 %v376
        %v713 = vunpack.c.h.b16 %v376
        %v714 = vunpack.c.l.b16 %v377
        %v715 = vunpack.c.h.b16 %v377
        %v716 = vunpack.c.l.b16 %v378
        %v717 = vunpack.c.h.b16 %v378
        %v718 = vunpack.c.l.b16 %v379
        %v719 = vunpack.c.h.b16 %v379
        %v720 = vunpack.c.l.b16 %v380
        %v721 = vunpack.c.h.b16 %v380
        %v722 = vunpack.c.l.b16 %v381
        %v723 = vunpack.c.h.b16 %v381
        %v724 = vunpack.c.l.b16 %v382
        %v725 = vunpack.c.h.b16 %v382
        %v726 = vunpack.c.l.b16 %v383
        %v727 = vunpack.c.h.b16 %v383
        %v728 = vunpack.c.l.b16 %v384
        %v729 = vunpack.c.h.b16 %v384
        %v730 = vunpack.c.l.b16 %v385
        %v731 = vunpack.c.h.b16 %v385
        %v732 = vunpack.c.l.b16 %v386
        %v733 = vunpack.c.h.b16 %v386
        %v734 = vunpack.c.l.b16 %v387
        %v735 = vunpack.c.h.b16 %v387
        %v736 = vunpack.c.l.b16 %v388
        %v737 = vunpack.c.h.b16 %v388
        %v738 = vunpack.c.l.b16 %v389
        %v739 = vunpack.c.h.b16 %v389
        %v740 = vunpack.c.l.b16 %v390
        %v741 = vunpack.c.h.b16 %v390
        %v742 = vunpack.c.l.b16 %v391
        %v743 = vunpack.c.h.b16 %v391
        %v744 = vunpack.c.l.b16 %v392
        %v745 = vunpack.c.h.b16 %v392
        %v746 = vunpack.c.l.b16 %v393
        %v747 = vunpack.c.h.b16 %v393
        %v748 = vunpack.c.l.b16 %v394
        %v749 = vunpack.c.h.b16 %v394
        %v750 = vunpack.c.l.b16 %v395
        %v751 = vunpack.c.h.b16 %v395
        %v752 = vunpack.c.l.b16 %v396
        %v753 = vunpack.c.h.b16 %v396
        %v754 = vunpack.c.l.b16 %v397
        %v755 = vunpack.c.h.b16 %v397
        %v756 = vunpack.c.l.b16 %v398
        %v757 = vunpack.c.h.b16 %v398
        %v758 = vunpack.c.l.b16 %v399
        %v759 = vunpack.c.h.b16 %v399
        %v760 = vunpack.c.l.b16 %v400
        %v761 = vunpack.c.h.b16 %v400
        %v762 = vunpack.c.l.b16 %v401
        %v763 = vunpack.c.h.b16 %v401
        %v764 = vunpack.c.l.b16 %v402
        %v765 = vunpack.c.h.b16 %v402
        %v766 = vunpack.c.l.b16 %v403
        %v767 = vunpack.c.h.b16 %v403
        %v768 = vunpack.c.l.b16 %v404
        %v769 = vunpack.c.h.b16 %v404
        %v770 = vunpack.c.l.b16 %v405
        %v771 = vunpack.c.h.b16 %v405
        %v772 = vunpack.c.l.b16 %v406
        %v773 = vunpack.c.h.b16 %v406
        %v774 = vunpack.c.l.b16 %v407
        %v775 = vunpack.c.h.b16 %v407
        %v776 = vunpack.c.l.b16 %v408
        %v777 = vunpack.c.h.b16 %v408
        %v778 = vunpack.c.l.b16 %v409
        %v779 = vunpack.c.h.b16 %v409
        %v780 = vunpack.c.l.b16 %v410
        %v781 = vunpack.c.h.b16 %v410
        %v782 = vunpack.c.l.b16 %v411
        %v783 = vunpack.c.h.b16 %v411
        %v784 = vunpack.c.l.b16 %v412
        %v785 = vunpack.c.h.b16 %v412
        %v786 = vunpack.c.l.b16 %v413
        %v787 = vunpack.c.h.b16 %v413
        %v788 = vunpack.c.l.b16 %v414
        %v789 = vunpack.c.h.b16 %v414
        %v790 = vunpack.c.l.b16 %v415
        %v791 = vunpack.c.h.b16 %v415
        %v792 = vunpack.c.l.b16 %v416
        %v793 = vunpack.c.h.b16 %v416
        %v794 = vunpack.c.l.b16 %v417
        %v795 = vunpack.c.h.b16 %v417
        %v796 = vunpack.c.l.b16 %v418
        %v797 = vunpack.c.h.b16 %v418
        %v798 = vunpack.c.l.b16 %v419
        %v799 = vunpack.c.h.b16 %v419
        %v800 = vunpack.c.l.b16 %v420
        %v801 = vunpack.c.h.b16 %v420
        %v802 = vunpack.c.l.b16 %v421
        %v803 = vunpack.c.h.b16 %v421
        %v804 = vunpack.c.l.b16 %v422
        %v805 = vunpack.c.h.b16 %v422
        %v806 = vunpack.c.l.b16 %v423
        %v807 = vunpack.c.h.b16 %v423
        %v808 = vunpack.c.l.b16 %v424
        %v809 = vunpack.c.h.b16 %v424
        %v810 = vunpack.c.l.b16 %v425
        %v811 = vunpack.c.h.b16 %v425
        %v812 = vunpack.c.l.b16 %v426
        %v813 = vunpack.c.h.b16 %v426
        %v814 = vunpack.c.l.b16 %v427
        %v815 = vunpack.c.h.b16 %v427
        %v816 = vunpack.c.l.b16 %v428
        %v817 = vunpack.c.h.b16 %v428
        %v818 = vunpack.c.l.b16 %v429
        %v819 = vunpack.c.h.b16 %v429
        %v820 = vunpack.c.l.b16 %v430
        %v821 = vunpack.c.h.b16 %v430
        %v822 = vunpack.c.l.b16 %v431
        %v823 = vunpack.c.h.b16 %v431
        %v824 = vunpack.c.l.b16 %v432
        %v825 = vunpack.c.h.b16 %v432
        %v826 = vunpack.c.l.b16 %v433
        %v827 = vunpack.c.h.b16 %v433
        %v828 = vunpack.c.l.b16 %v434
        %v829 = vunpack.c.h.b16 %v434
        %v830 = vunpack.c.l.b16 %v435
        %v831 = vunpack.c.h.b16 %v435
        %v832 = vunpack.c.l.b16 %v436
        %v833 = vunpack.c.h.b16 %v436
        %v834 = vunpack.c.l.b16 %v437
        %v835 = vunpack.c.h.b16 %v437
        %v836 = vunpack.c.l.b16 %v438
        %v837 = vunpack.c.h.b16 %v438
        %v838 = vunpack.c.l.b16 %v439
        %v839 = vunpack.c.h.b16 %v439
        %v840 = vunpack.c.l.b16 %v440
        %v841 = vunpack.c.h.b16 %v440
        %v842 = vunpack.c.l.b16 %v441
        %v843 = vunpack.c.h.b16 %v441
        %v844 = vunpack.c.l.b16 %v442
        %v845 = vunpack.c.h.b16 %v442
        %v846 = vunpack.c.l.b16 %v443
        %v847 = vunpack.c.h.b16 %v443
        %v848 = vunpack.c.l.b16 %v444
        %v849 = vunpack.c.h.b16 %v444
        %v850 = vunpack.c.l.b16 %v445
        %v851 = vunpack.c.h.b16 %v445
        %v852 = vunpack.c.l.b16 %v446
        %v853 = vunpack.c.h.b16 %v446
        %v854 = vunpack.c.l.b16 %v447
        %v855 = vunpack.c.h.b16 %v447
        %v856 = vunpack.c.l.b16 %v448
        %v857 = vunpack.c.h.b16 %v448
        %v858 = vunpack.c.l.b16 %v449
        %v859 = vunpack.c.h.b16 %v449
        %v860 = vunpack.c.l.b16 %v450
        %v861 = vunpack.c.h.b16 %v450
        %v862 = vunpack.c.l.b16 %v451
        %v863 = vunpack.c.h.b16 %v451
        %v864 = vunpack.c.l.b16 %v452
        %v865 = vunpack.c.h.b16 %v452
        %v866 = vunpack.c.l.b16 %v453
        %v867 = vunpack.c.h.b16 %v453
        %v868 = vunpack.c.l.b16 %v454
        %v869 = vunpack.c.h.b16 %v454
        %v870 = vunpack.c.l.b16 %v455
        %v871 = vunpack.c.h.b16 %v455
        %v872 = vunpack.c.l.b16 %v456
        %v873 = vunpack.c.h.b16 %v456
        %v874 = vunpack.c.l.b16 %v457
        %v875 = vunpack.c.h.b16 %v457
        %v876 = vunpack.c.l.b16 %v458
        %v877 = vunpack.c.h.b16 %v458
        %v878 = vunpack.c.l.b16 %v459
        %v879 = vunpack.c.h.b16 %v459
        %v880 = vunpack.c.l.b16 %v460
        %v881 = vunpack.c.h.b16 %v460
        %v882 = vunpack.c.l.b16 %v461
        %v883 = vunpack.c.h.b16 %v461
        %v884 = vunpack.c.l.b16 %v462
        %v885 = vunpack.c.h.b16 %v462
        %v886 = vunpack.c.l.b16 %v463
        %v887 = vunpack.c.h.b16 %v463
        %v888 = vunpack.c.l.b16 %v464
        %v889 = vunpack.c.h.b16 %v464
        %v890 = vunpack.c.l.b16 %v465
        %v891 = vunpack.c.h.b16 %v465
        %v892 = vunpack.c.l.b16 %v466
        %v893 = vunpack.c.h.b16 %v466
        %v894 = vunpack.c.l.b16 %v467
        %v895 = vunpack.c.h.b16 %v467
        %v896 = vunpack.c.l.b16 %v468
        %v897 = vunpack.c.h.b16 %v468
        %v898 = vunpack.c.l.b16 %v469
        %v899 = vunpack.c.h.b16 %v469
        %v900 = vunpack.c.l.b16 %v470
        %v901 = vunpack.c.h.b16 %v470
        %v902 = vunpack.c.l.b16 %v471
        %v903 = vunpack.c.h.b16 %v471
        %v904 = vunpack.c.l.b16 %v472
        %v905 = vunpack.c.h.b16 %v472
        %v906 = vunpack.c.l.b16 %v473
        %v907 = vunpack.c.h.b16 %v473
        %v908 = vunpack.c.l.b16 %v474
        %v909 = vunpack.c.h.b16 %v474
        %v910 = vunpack.c.l.b16 %v475
        %v911 = vunpack.c.h.b16 %v475
        %v912 = vunpack.c.l.b16 %v476
        %v913 = vunpack.c.h.b16 %v476
        %v914 = vunpack.c.l.b16 %v477
        %v915 = vunpack.c.h.b16 %v477
        %v916 = vunpack.c.l.b16 %v478
        %v917 = vunpack.c.h.b16 %v478
        %v918 = vunpack.c.l.b16 %v479
        %v919 = vunpack.c.h.b16 %v479
        %v920 = vunpack.c.l.b16 %v480
        %v921 = vunpack.c.h.b16 %v480
        %v922 = vunpack.c.l.b16 %v481
        %v923 = vunpack.c.h.b16 %v481
        %v924 = vunpack.c.l.b16 %v482
        %v925 = vunpack.c.h.b16 %v482
        %v926 = vunpack.c.l.b16 %v483
        %v927 = vunpack.c.h.b16 %v483
        %v928 = vunpack.c.l.b16 %v484
        %v929 = vunpack.c.h.b16 %v484
        %v930 = vunpack.c.l.b16 %v485
        %v931 = vunpack.c.h.b16 %v485
        %v932 = vunpack.c.l.b16 %v486
        %v933 = vunpack.c.h.b16 %v486
        %v934 = vunpack.c.l.b16 %v487
        %v935 = vunpack.c.h.b16 %v487
        %v936 = vunpack.c.l.b16 %v488
        %v937 = vunpack.c.h.b16 %v488
        %v938 = vunpack.c.l.b16 %v489
        %v939 = vunpack.c.h.b16 %v489
        %v940 = vunpack.c.l.b16 %v490
        %v941 = vunpack.c.h.b16 %v490
        %v942 = vunpack.c.l.b16 %v491
        %v943 = vunpack.c.h.b16 %v491
        %v944 = vunpack.c.l.b16 %v492
        %v945 = vunpack.c.h.b16 %v492
        %v946 = vunpack.c.l.b16 %v493
        %v947 = vunpack.c.h.b16 %v493
        %v948 = vunpack.c.l.b16 %v494
        %v949 = vunpack.c.h.b16 %v494
        %v950 = vunpack.c.l.b16 %v495
        %v951 = vunpack.c.h.b16 %v495
        %v952 = vunpack.c.l.b16 %v496
        %v953 = vunpack.c.h.b16 %v496
        %v954 = vunpack.c.l.b16 %v497
        %v955 = vunpack.c.h.b16 %v497
        %v956 = vunpack.c.l.b16 %v498
        %v957 = vunpack.c.h.b16 %v498
        %v958 = vunpack.c.l.b16 %v499
        %v959 = vunpack.c.h.b16 %v499
        %v960 = vunpack.c.l.b16 %v500
        %v961 = vunpack.c.h.b16 %v500
        %v962 = vunpack.c.l.b16 %v501
        %v963 = vunpack.c.h.b16 %v501
        %v964 = vunpack.c.l.b16 %v502
        %v965 = vunpack.c.h.b16 %v502
        %v966 = vunpack.c.l.b16 %v503
        %v967 = vunpack.c.h.b16 %v503
        %v968 = vunpack.c.l.b16 %v504
        %v969 = vunpack.c.h.b16 %v504
        %v970 = vunpack.c.l.b16 %v505
        %v971 = vunpack.c.h.b16 %v505
        %v972 = vunpack.c.l.b16 %v506
        %v973 = vunpack.c.h.b16 %v506
        %v974 = vunpack.c.l.b16 %v507
        %v975 = vunpack.c.h.b16 %v507
        %v976 = vunpack.c.l.b16 %v508
        %v977 = vunpack.c.h.b16 %v508
        %v978 = vunpack.c.l.b16 %v509
        %v979 = vunpack.c.h.b16 %v509
        %v980 = vunpack.c.l.b16 %v510
        %v981 = vunpack.c.h.b16 %v510
        %v982 = vunpack.c.l.b16 %v511
        %v983 = vunpack.c.h.b16 %v511
        %v984 = vpack.c.b16 %v688, %v684
        %v985 = vpack.c.b16 %v689, %v685
        %v986 = vpack.c.b16 %v690, %v686
        %v987 = vpack.c.b16 %v691, %v687
        %v988 = vpack.c.b16 %v696, %v692
        %v989 = vpack.c.b16 %v697, %v693
        %v990 = vpack.c.b16 %v698, %v694
        %v991 = vpack.c.b16 %v699, %v695
        %v992 = vpack.c.b16 %v704, %v700
        %v993 = vpack.c.b16 %v705, %v701
        %v994 = vpack.c.b16 %v706, %v702
        %v995 = vpack.c.b16 %v707, %v703
        %v996 = vpack.c.b16 %v712, %v708
        %v997 = vpack.c.b16 %v713, %v709
        %v998 = vpack.c.b16 %v714, %v710
        %v999 = vpack.c.b16 %v715, %v711
        %v1000 = vpack.c.b16 %v720, %v716
        %v1001 = vpack.c.b16 %v721, %v717
        %v1002 = vpack.c.b16 %v722, %v718
        %v1003 = vpack.c.b16 %v723, %v719
        %v1004 = vpack.c.b16 %v728, %v724
        %v1005 = vpack.c.b16 %v729, %v725
        %v1006 = vpack.c.b16 %v730, %v726
        %v1007 = vpack.c.b16 %v731, %v727
        %v1008 = vpack.c.b16 %v736, %v732
        %v1009 = vpack.c.b16 %v737, %v733
        %v1010 = vpack.c.b16 %v738, %v734
        %v1011 = vpack.c.b16 %v739, %v735
        %v1012 = vpack.c.b16 %v744, %v740
        %v1013 = vpack.c.b16 %v745, %v741
        %v1014 = vpack.c.b16 %v746, %v742
        %v1015 = vpack.c.b16 %v747, %v743
        %v1016 = vpack.c.b16 %v752, %v748
        %v1017 = vpack.c.b16 %v753, %v749
        %v1018 = vpack.c.b16 %v754, %v750
        %v1019 = vpack.c.b16 %v755, %v751
        %v1020 = vpack.c.b16 %v760, %v756
        %v1021 = vpack.c.b16 %v761, %v757
        %v1022 = vpack.c.b16 %v762, %v758
        %v1023 = vpack.c.b16 %v763, %v759
        %v1024 = vpack.c.b16 %v768, %v764
        %v1025 = vpack.c.b16 %v769, %v765
        %v1026 = vpack.c.b16 %v770, %v766
        %v1027 = vpack.c.b16 %v771, %v767
        %v1028 = vpack.c.b16 %v776, %v772
        %v1029 = vpack.c.b16 %v777, %v773
        %v1030 = vpack.c.b16 %v778, %v774
        %v1031 = vpack.c.b16 %v779, %v775
        %v1032 = vpack.c.b16 %v784, %v780
        %v1033 = vpack.c.b16 %v785, %v781
        %v1034 = vpack.c.b16 %v786, %v782
        %v1035 = vpack.c.b16 %v787, %v783
        %v1036 = vpack.c.b16 %v792, %v788
        %v1037 = vpack.c.b16 %v793, %v789
        %v1038 = vpack.c.b16 %v794, %v790
        %v1039 = vpack.c.b16 %v795, %v791
        %v1040 = vpack.c.b16 %v800, %v796
        %v1041 = vpack.c.b16 %v801, %v797
        %v1042 = vpack.c.b16 %v802, %v798
        %v1043 = vpack.c.b16 %v803, %v799
        %v1044 = vpack.c.b16 %v808, %v804
        %v1045 = vpack.c.b16 %v809, %v805
        %v1046 = vpack.c.b16 %v810, %v806
        %v1047 = vpack.c.b16 %v811, %v807
        %v1048 = vpack.c.b16 %v816, %v812
        %v1049 = vpack.c.b16 %v817, %v813
        %v1050 = vpack.c.b16 %v818, %v814
        %v1051 = vpack.c.b16 %v819, %v815
        %v1052 = vpack.c.b16 %v824, %v820
        %v1053 = vpack.c.b16 %v825, %v821
        %v1054 = vpack.c.b16 %v826, %v822
        %v1055 = vpack.c.b16 %v827, %v823
        %v1056 = vpack.c.b16 %v832, %v828
        %v1057 = vpack.c.b16 %v833, %v829
        %v1058 = vpack.c.b16 %v834, %v830
        %v1059 = vpack.c.b16 %v835, %v831
        %v1060 = vpack.c.b16 %v840, %v836
        %v1061 = vpack.c.b16 %v841, %v837
        %v1062 = vpack.c.b16 %v842, %v838
        %v1063 = vpack.c.b16 %v843, %v839
        %v1064 = vpack.c.b16 %v848, %v844
        %v1065 = vpack.c.b16 %v849, %v845
        %v1066 = vpack.c.b16 %v850, %v846
        %v1067 = vpack.c.b16 %v851, %v847
        %v1068 = vpack.c.b16 %v856, %v852
        %v1069 = vpack.c.b16 %v857, %v853
        %v1070 = vpack.c.b16 %v858, %v854
        %v1071 = vpack.c.b16 %v859, %v855
        %v1072 = vpack.c.b16 %v864, %v860
        %v1073 = vpack.c.b16 %v865, %v861
        %v1074 = vpack.c.b16 %v866, %v862
        %v1075 = vpack.c.b16 %v867, %v863
        %v1076 = vpack.c.b16 %v872, %v868
        %v1077 = vpack.c.b16 %v873, %v869
        %v1078 = vpack.c.b16 %v874, %v870
        %v1079 = vpack.c.b16 %v875, %v871
        %v1080 = vpack.c.b16 %v880, %v876
        %v1081 = vpack.c.b16 %v881, %v877
        %v1082 = vpack.c.b16 %v882, %v878
        %v1083 = vpack.c.b16 %v883, %v879
        %v1084 = vpack.c.b16 %v888, %v884
        %v1085 = vpack.c.b16 %v889, %v885
        %v1086 = vpack.c.b16 %v890, %v886
        %v1087 = vpack.c.b16 %v891, %v887
        %v1088 = vpack.c.b16 %v896, %v892
        %v1089 = vpack.c.b16 %v897, %v893
        %v1090 = vpack.c.b16 %v898, %v894
        %v1091 = vpack.c.b16 %v899, %v895
        %v1092 = vpack.c.b16 %v904, %v900
        %v1093 = vpack.c.b16 %v905, %v901
        %v1094 = vpack.c.b16 %v906, %v902
        %v1095 = vpack.c.b16 %v907, %v903
        %v1096 = vpack.c.b16 %v912, %v908
        %v1097 = vpack.c.b16 %v913, %v909
        %v1098 = vpack.c.b16 %v914, %v910
        %v1099 = vpack.c.b16 %v915, %v911
        %v1100 = vpack.c.b16 %v920, %v916
        %v1101 = vpack.c.b16 %v921, %v917
        %v1102 = vpack.c.b16 %v922, %v918
        %v1103 = vpack.c.b16 %v923, %v919
        %v1104 = vpack.c.b16 %v928, %v924
        %v1105 = vpack.c.b16 %v929, %v925
        %v1106 = vpack.c.b16 %v930, %v926
        %v1107 = vpack.c.b16 %v931, %v927
        %v1108 = vpack.c.b16 %v936, %v932
        %v1109 = vpack.c.b16 %v937, %v933
        %v1110 = vpack.c.b16 %v938, %v934
        %v1111 = vpack.c.b16 %v939, %v935
        %v1112 = vpack.c.b16 %v944, %v940
        %v1113 = vpack.c.b16 %v945, %v941
        %v1114 = vpack.c.b16 %v946, %v942
        %v1115 = vpack.c.b16 %v947, %v943
        %v1116 = vpack.c.b16 %v952, %v948
        %v1117 = vpack.c.b16 %v953, %v949
        %v1118 = vpack.c.b16 %v954, %v950
        %v1119 = vpack.c.b16 %v955, %v951
        %v1120 = vpack.c.b16 %v960, %v956
        %v1121 = vpack.c.b16 %v961, %v957
        %v1122 = vpack.c.b16 %v962, %v958
        %v1123 = vpack.c.b16 %v963, %v959
        %v1124 = vpack.c.b16 %v968, %v964
        %v1125 = vpack.c.b16 %v969, %v965
        %v1126 = vpack.c.b16 %v970, %v966
        %v1127 = vpack.c.b16 %v971, %v967
        %v1128 = vpack.c.b16 %v976, %v972
        %v1129 = vpack.c.b16 %v977, %v973
        %v1130 = vpack.c.b16 %v978, %v974
        %v1131 = vpack.c.b16 %v979, %v975
        %v1132 = vpack.c.b16 %v980, %v980
        %v1133 = vpack.c.b16 %v981, %v981
        %v1134 = vpack.c.b16 %v982, %v982
        %v1135 = vpack.c.b16 %v983, %v983
        %vm1284 = vcmask 719872
        %v1286 = vsel %vm1284, %v361, 0
        %vm1288 = vcmask 1043456
        %v1290 = vsel %vm1288, %v1132, 0
        %v1293 = vsel %vm1288, %v1133, 0
        %v1296 = vsel %vm1288, %v1134, 0
        %v1299 = vsel %vm1288, %v1135, 0
        %1301 = vmatprep.subr.bf16.mxu0 %v1013
        %1302 = vmatpush1.bf16.msra.mxu0 %v1012
        %1303 = vmatprep.subr.bf16.mxu0 %v1009
        %1304 = vmatpush1.bf16.msra.mxu0 %v1008
        %1305 = vmatprep.subr.bf16.mxu0 %v1005
        %1306 = vmatpush1.bf16.msra.mxu0 %v1004
        %1307 = vmatprep.subr.bf16.mxu0 %v1001
        %1308 = vmatpush1.bf16.msra.mxu0 %v1000
        %1309 = vmatprep.subr.bf16.mxu0 %v997
        %1310 = vmatpush1.bf16.msra.mxu0 %v996
        %1311 = vmatprep.subr.bf16.mxu0 %v993
        %1312 = vmatpush1.bf16.msra.mxu0 %v992
        %1313 = vmatprep.subr.bf16.mxu0 %v989
        %1314 = vmatpush1.bf16.msra.mxu0 %v988
        %1315 = vmatprep.subr.bf16.mxu0 %v985
        %1316 = vmatpush1.bf16.msra.mxu0 %v984
        %1317 = vmatprep.subr.bf16.mxu0 %v1045
        %1318 = vmatpush2.bf16.msra.mxu0 %v1044
        %1319 = vmatprep.subr.bf16.mxu0 %v1041
        %1320 = vmatpush2.bf16.msra.mxu0 %v1040
        %1321 = vmatprep.subr.bf16.mxu0 %v1037
        %1322 = vmatpush2.bf16.msra.mxu0 %v1036
        %1323 = vmatprep.subr.bf16.mxu0 %v1033
        %1324 = vmatpush2.bf16.msra.mxu0 %v1032
        %1325 = vmatprep.subr.bf16.mxu0 %v1029
        %1326 = vmatpush2.bf16.msra.mxu0 %v1028
        %1327 = vmatprep.subr.bf16.mxu0 %v1025
        %1328 = vmatpush2.bf16.msra.mxu0 %v1024
        %1329 = vmatprep.subr.bf16.mxu0 %v1021
        %1330 = vmatpush2.bf16.msra.mxu0 %v1020
        %1331 = vmatprep.subr.bf16.mxu0 %v1017
        %1332 = vmatpush2.bf16.msra.mxu0 %v1016
        %1333 = vmatprep.mubr.bf16.mxu0 %v358
        %1334 = vmatmul.mubr.bf16.gmra.mxu0 %v357
        %v1335 = vpop.f32.mrf.mxu0
        %v1336 = vadd.f32 %v517, %v1335
        %v1337 = vpop.f32.mrf.mxu0
        %v1338 = vadd.f32 %v521, %v1337
        %v1339 = vpop.f32.mrf.mxu0
        %v1340 = vpop.f32.mrf.mxu0
        %1341 = vdwg.mxu0
        %1342 = vmatprep.subr.bf16.mxu0 %v1077
        %1343 = vmatpush1.bf16.msra.mxu0 %v1076
        %1344 = vmatprep.subr.bf16.mxu0 %v1073
        %1345 = vmatpush1.bf16.msra.mxu0 %v1072
        %1346 = vmatprep.subr.bf16.mxu0 %v1069
        %1347 = vmatpush1.bf16.msra.mxu0 %v1068
        %1348 = vmatprep.subr.bf16.mxu0 %v1065
        %1349 = vmatpush1.bf16.msra.mxu0 %v1064
        %1350 = vmatprep.subr.bf16.mxu0 %v1061
        %1351 = vmatpush1.bf16.msra.mxu0 %v1060
        %1352 = vmatprep.subr.bf16.mxu0 %v1057
        %1353 = vmatpush1.bf16.msra.mxu0 %v1056
        %1354 = vmatprep.subr.bf16.mxu0 %v1053
        %1355 = vmatpush1.bf16.msra.mxu0 %v1052
        %1356 = vmatprep.subr.bf16.mxu0 %v1049
        %1357 = vmatpush1.bf16.msra.mxu0 %v1048
        %1358 = vmatprep.subr.bf16.mxu0 %v1109
        %1359 = vmatpush2.bf16.msra.mxu0 %v1108
        %1360 = vmatprep.subr.bf16.mxu0 %v1105
        %1361 = vmatpush2.bf16.msra.mxu0 %v1104
        %1362 = vmatprep.subr.bf16.mxu0 %v1101
        %1363 = vmatpush2.bf16.msra.mxu0 %v1100
        %1364 = vmatprep.subr.bf16.mxu0 %v1097
        %1365 = vmatpush2.bf16.msra.mxu0 %v1096
        %1366 = vmatprep.subr.bf16.mxu0 %v1093
        %1367 = vmatpush2.bf16.msra.mxu0 %v1092
        %1368 = vmatprep.subr.bf16.mxu0 %v1089
        %1369 = vmatpush2.bf16.msra.mxu0 %v1088
        %1370 = vmatprep.subr.bf16.mxu0 %v1085
        %1371 = vmatpush2.bf16.msra.mxu0 %v1084
        %1372 = vmatprep.subr.bf16.mxu0 %v1081
        %1373 = vmatpush2.bf16.msra.mxu0 %v1080
        %1374 = vmatprep.mubr.bf16.mxu0 %v360
        %1375 = vmatmul.mubr.bf16.gmra.mxu0 %v359
        %v1376 = vpop.f32.mrf.mxu0
        %v1377 = vadd.f32 %v1336, %v1376
        %v1378 = vpop.f32.mrf.mxu0
        %v1379 = vadd.f32 %v1338, %v1378
        %v1380 = vpop.f32.mrf.mxu0
        %v1381 = vpop.f32.mrf.mxu0
        %1382 = vdwg.mxu0
        %1383 = vmatprep.subr.bf16.mxu0 0
        %1384 = vmatpush1.bf16.msra.mxu0 0
        %1385 = vmatprep.subr.bf16.mxu0 0
        %1386 = vmatpush1.bf16.msra.mxu0 0
        %1387 = vmatprep.subr.bf16.mxu0 %v1293
        %1388 = vmatpush1.bf16.msra.mxu0 %v1290
        %1389 = vmatprep.subr.bf16.mxu0 %v1129
        %1390 = vmatpush1.bf16.msra.mxu0 %v1128
        %1391 = vmatprep.subr.bf16.mxu0 %v1125
        %1392 = vmatpush1.bf16.msra.mxu0 %v1124
        %1393 = vmatprep.subr.bf16.mxu0 %v1121
        %1394 = vmatpush1.bf16.msra.mxu0 %v1120
        %1395 = vmatprep.subr.bf16.mxu0 %v1117
        %1396 = vmatpush1.bf16.msra.mxu0 %v1116
        %1397 = vmatprep.subr.bf16.mxu0 %v1113
        %1398 = vmatpush1.bf16.msra.mxu0 %v1112
        %1399 = vmatprep.subr.bf16.mxu0 0
        %1400 = vmatpush2.bf16.msra.mxu0 0
        %1401 = vmatprep.subr.bf16.mxu0 0
        %1402 = vmatpush2.bf16.msra.mxu0 0
        %1403 = vmatprep.subr.bf16.mxu0 0
        %1404 = vmatpush2.bf16.msra.mxu0 0
        %1405 = vmatprep.subr.bf16.mxu0 0
        %1406 = vmatpush2.bf16.msra.mxu0 0
        %1407 = vmatprep.subr.bf16.mxu0 0
        %1408 = vmatpush2.bf16.msra.mxu0 0
        %1409 = vmatprep.subr.bf16.mxu0 0
        %1410 = vmatpush2.bf16.msra.mxu0 0
        %1411 = vmatprep.subr.bf16.mxu0 0
        %1412 = vmatpush2.bf16.msra.mxu0 0
        %1413 = vmatprep.subr.bf16.mxu0 0
        %1414 = vmatpush2.bf16.msra.mxu0 0
        %1415 = vmatprep.mubr.bf16.mxu0 0
        %1416 = vmatmul.mubr.bf16.gmra.mxu0 %v1286
        %v1417 = vpop.f32.mrf.mxu0
        %v1418 = vadd.f32 %v1377, %v1417
        %v1419 = vpop.f32.mrf.mxu0
        %v1420 = vadd.f32 %v1379, %v1419
        %v1421 = vpop.f32.mrf.mxu0
        %v1422 = vpop.f32.mrf.mxu0
        %1423 = vdwg.mxu0
        %1424 = vmatprep.subr.bf16.mxu0 %v1015
        %1425 = vmatpush1.bf16.msra.mxu0 %v1014
        %1426 = vmatprep.subr.bf16.mxu0 %v1011
        %1427 = vmatpush1.bf16.msra.mxu0 %v1010
        %1428 = vmatprep.subr.bf16.mxu0 %v1007
        %1429 = vmatpush1.bf16.msra.mxu0 %v1006
        %1430 = vmatprep.subr.bf16.mxu0 %v1003
        %1431 = vmatpush1.bf16.msra.mxu0 %v1002
        %1432 = vmatprep.subr.bf16.mxu0 %v999
        %1433 = vmatpush1.bf16.msra.mxu0 %v998
        %1434 = vmatprep.subr.bf16.mxu0 %v995
        %1435 = vmatpush1.bf16.msra.mxu0 %v994
        %1436 = vmatprep.subr.bf16.mxu0 %v991
        %1437 = vmatpush1.bf16.msra.mxu0 %v990
        %1438 = vmatprep.subr.bf16.mxu0 %v987
        %1439 = vmatpush1.bf16.msra.mxu0 %v986
        %1440 = vmatprep.subr.bf16.mxu0 %v1047
        %1441 = vmatpush2.bf16.msra.mxu0 %v1046
        %1442 = vmatprep.subr.bf16.mxu0 %v1043
        %1443 = vmatpush2.bf16.msra.mxu0 %v1042
        %1444 = vmatprep.subr.bf16.mxu0 %v1039
        %1445 = vmatpush2.bf16.msra.mxu0 %v1038
        %1446 = vmatprep.subr.bf16.mxu0 %v1035
        %1447 = vmatpush2.bf16.msra.mxu0 %v1034
        %1448 = vmatprep.subr.bf16.mxu0 %v1031
        %1449 = vmatpush2.bf16.msra.mxu0 %v1030
        %1450 = vmatprep.subr.bf16.mxu0 %v1027
        %1451 = vmatpush2.bf16.msra.mxu0 %v1026
        %1452 = vmatprep.subr.bf16.mxu0 %v1023
        %1453 = vmatpush2.bf16.msra.mxu0 %v1022
        %1454 = vmatprep.subr.bf16.mxu0 %v1019
        %1455 = vmatpush2.bf16.msra.mxu0 %v1018
        %1456 = vmatprep.mubr.bf16.mxu0 %v358
        %1457 = vmatmul.mubr.bf16.gmra.mxu0 %v357
        %v1458 = vpop.f32.mrf.mxu0
        %v1459 = vadd.f32 %v525, %v1458
        %v1460 = vpop.f32.mrf.mxu0
        %v1461 = vadd.f32 %v529, %v1460
        %v1462 = vpop.f32.mrf.mxu0
        %v1463 = vpop.f32.mrf.mxu0
        %1464 = vdwg.mxu0
        %1465 = vmatprep.subr.bf16.mxu0 %v1079
        %1466 = vmatpush1.bf16.msra.mxu0 %v1078
        %1467 = vmatprep.subr.bf16.mxu0 %v1075
        %1468 = vmatpush1.bf16.msra.mxu0 %v1074
        %1469 = vmatprep.subr.bf16.mxu0 %v1071
        %1470 = vmatpush1.bf16.msra.mxu0 %v1070
        %1471 = vmatprep.subr.bf16.mxu0 %v1067
        %1472 = vmatpush1.bf16.msra.mxu0 %v1066
        %1473 = vmatprep.subr.bf16.mxu0 %v1063
        %1474 = vmatpush1.bf16.msra.mxu0 %v1062
        %1475 = vmatprep.subr.bf16.mxu0 %v1059
        %1476 = vmatpush1.bf16.msra.mxu0 %v1058
        %1477 = vmatprep.subr.bf16.mxu0 %v1055
        %1478 = vmatpush1.bf16.msra.mxu0 %v1054
        %1479 = vmatprep.subr.bf16.mxu0 %v1051
        %1480 = vmatpush1.bf16.msra.mxu0 %v1050
        %1481 = vmatprep.subr.bf16.mxu0 %v1111
        %1482 = vmatpush2.bf16.msra.mxu0 %v1110
        %1483 = vmatprep.subr.bf16.mxu0 %v1107
        %1484 = vmatpush2.bf16.msra.mxu0 %v1106
        %1485 = vmatprep.subr.bf16.mxu0 %v1103
        %1486 = vmatpush2.bf16.msra.mxu0 %v1102
        %1487 = vmatprep.subr.bf16.mxu0 %v1099
        %1488 = vmatpush2.bf16.msra.mxu0 %v1098
        %1489 = vmatprep.subr.bf16.mxu0 %v1095
        %1490 = vmatpush2.bf16.msra.mxu0 %v1094
        %1491 = vmatprep.subr.bf16.mxu0 %v1091
        %1492 = vmatpush2.bf16.msra.mxu0 %v1090
        %1493 = vmatprep.subr.bf16.mxu0 %v1087
        %1494 = vmatpush2.bf16.msra.mxu0 %v1086
        %1495 = vmatprep.subr.bf16.mxu0 %v1083
        %1496 = vmatpush2.bf16.msra.mxu0 %v1082
        %1497 = vmatprep.mubr.bf16.mxu0 %v360
        %1498 = vmatmul.mubr.bf16.gmra.mxu0 %v359
        %v1499 = vpop.f32.mrf.mxu0
        %v1500 = vadd.f32 %v1459, %v1499
        %v1501 = vpop.f32.mrf.mxu0
        %v1502 = vadd.f32 %v1461, %v1501
        %v1503 = vpop.f32.mrf.mxu0
        %v1504 = vpop.f32.mrf.mxu0
        %1505 = vdwg.mxu0
        %1506 = vmatprep.subr.bf16.mxu0 0
        %1507 = vmatpush1.bf16.msra.mxu0 0
        %1508 = vmatprep.subr.bf16.mxu0 0
        %1509 = vmatpush1.bf16.msra.mxu0 0
        %1510 = vmatprep.subr.bf16.mxu0 %v1299
        %1511 = vmatpush1.bf16.msra.mxu0 %v1296
        %1512 = vmatprep.subr.bf16.mxu0 %v1131
        %1513 = vmatpush1.bf16.msra.mxu0 %v1130
        %1514 = vmatprep.subr.bf16.mxu0 %v1127
        %1515 = vmatpush1.bf16.msra.mxu0 %v1126
        %1516 = vmatprep.subr.bf16.mxu0 %v1123
        %1517 = vmatpush1.bf16.msra.mxu0 %v1122
        %1518 = vmatprep.subr.bf16.mxu0 %v1119
        %1519 = vmatpush1.bf16.msra.mxu0 %v1118
        %1520 = vmatprep.subr.bf16.mxu0 %v1115
        %1521 = vmatpush1.bf16.msra.mxu0 %v1114
        %1522 = vmatprep.subr.bf16.mxu0 0
        %1523 = vmatpush2.bf16.msra.mxu0 0
        %1524 = vmatprep.subr.bf16.mxu0 0
        %1525 = vmatpush2.bf16.msra.mxu0 0
        %1526 = vmatprep.subr.bf16.mxu0 0
        %1527 = vmatpush2.bf16.msra.mxu0 0
        %1528 = vmatprep.subr.bf16.mxu0 0
        %1529 = vmatpush2.bf16.msra.mxu0 0
        %1530 = vmatprep.subr.bf16.mxu0 0
        %1531 = vmatpush2.bf16.msra.mxu0 0
        %1532 = vmatprep.subr.bf16.mxu0 0
        %1533 = vmatpush2.bf16.msra.mxu0 0
        %1534 = vmatprep.subr.bf16.mxu0 0
        %1535 = vmatpush2.bf16.msra.mxu0 0
        %1536 = vmatprep.subr.bf16.mxu0 0
        %1537 = vmatpush2.bf16.msra.mxu0 0
        %1538 = vmatprep.mubr.bf16.mxu0 0
        %1539 = vmatmul.mubr.bf16.gmra.mxu0 %v1286
        %v1540 = vpop.f32.mrf.mxu0
        %v1541 = vadd.f32 %v1500, %v1540
        %v1542 = vpop.f32.mrf.mxu0
        %v1543 = vadd.f32 %v1502, %v1542
        %v1544 = vpop.f32.mrf.mxu0
        %v1545 = vpop.f32.mrf.mxu0
        %1546 = vdwg.mxu0
        %v1547 = vmax.f32 %v1418, 0.0
        %v1548 = vmax.f32 %v1420, 0.0
        %v1549 = vmax.f32 %v1541, 0.0
        %v1550 = vmax.f32 %v1543, 0.0
        %v1551 = vpack.c.bf16 %v1547, %v1547
        %v1552 = vpack.c.bf16 %v1548, %v1548
        %v1553 = vpack.c.bf16 %v1549, %v1549
        %v1554 = vpack.c.bf16 %v1550, %v1550
        %v1555 = vld [vmem:[#allocation8] sm:$0xff]
        %v1556 = vld [vmem:[#allocation8 + $0x8] sm:$0xff]
        %v1557 = vld [vmem:[#allocation8 + $0x10] sm:$0xff]
        %v1558 = vld [vmem:[#allocation8 + $0x18] sm:$0xff]
        %v1559 = vld [vmem:[#allocation8 + $0x20] sm:$0xff]
        %v1560 = vld [vmem:[#allocation8 + $0x28] sm:$0xff]
        %v1561 = vld [vmem:[#allocation8 + $0x30] sm:$0xff]
        %v1562 = vld [vmem:[#allocation8 + $0x38] sm:$0xff]
        %v1563 = vld [vmem:[#allocation8 + $0x40] sm:$0xff]
        %v1564 = vld [vmem:[#allocation8 + $0x48] sm:$0xff]
        %v1565 = vld [vmem:[#allocation8 + $0x50] sm:$0xff]
        %v1566 = vld [vmem:[#allocation8 + $0x58] sm:$0xff]
        %v1567 = vld [vmem:[#allocation8 + $0x60] sm:$0xff]
        %v1568 = vld [vmem:[#allocation8 + $0x68] sm:$0xff]
        %v1569 = vld [vmem:[#allocation8 + $0x70] sm:$0xff]
        %v1570 = vld [vmem:[#allocation8 + $0x78] sm:$0xff]
        %v1571 = vld [vmem:[#allocation8 + $0x80] sm:$0xff]
        %v1572 = vld [vmem:[#allocation8 + $0x88] sm:$0xff]
        %v1573 = vld [vmem:[#allocation8 + $0x90] sm:$0xff]
        %v1574 = vld [vmem:[#allocation8 + $0x98] sm:$0xff]
        %v1575 = vld [vmem:[#allocation8 + $0xa0] sm:$0xff]
        %v1576 = vld [vmem:[#allocation8 + $0xa8] sm:$0xff]
        %v1577 = vld [vmem:[#allocation8 + $0xb0] sm:$0xff]
        %v1578 = vld [vmem:[#allocation8 + $0xb8] sm:$0xff]
        %v1579 = vld [vmem:[#allocation8 + $0xc0] sm:$0xff]
        %v1580 = vld [vmem:[#allocation8 + $0xc8] sm:$0xff]
        %v1581 = vld [vmem:[#allocation8 + $0xd0] sm:$0xff]
        %v1582 = vld [vmem:[#allocation8 + $0xd8] sm:$0xff]
        %v1583 = vld [vmem:[#allocation8 + $0xe0] sm:$0xff]
        %v1584 = vld [vmem:[#allocation8 + $0xe8] sm:$0xff]
        %v1585 = vld [vmem:[#allocation8 + $0xf0] sm:$0xff]
        %v1586 = vld [vmem:[#allocation8 + $0xf8] sm:$0xff]
        %v1587 = vld [vmem:[#allocation8 + $0x100] sm:$0xff]
        %v1588 = vld [vmem:[#allocation8 + $0x108] sm:$0xff]
        %v1589 = vld [vmem:[#allocation8 + $0x110] sm:$0xff]
        %v1590 = vld [vmem:[#allocation8 + $0x118] sm:$0xff]
        %v1591 = vld [vmem:[#allocation8 + $0x120] sm:$0xff]
        %v1592 = vld [vmem:[#allocation8 + $0x128] sm:$0xff]
        %v1593 = vld [vmem:[#allocation8 + $0x130] sm:$0xff]
        %v1594 = vld [vmem:[#allocation8 + $0x138] sm:$0xff]
        %v1595 = vld [vmem:[#allocation8 + $0x140] sm:$0xff]
        %v1596 = vld [vmem:[#allocation8 + $0x148] sm:$0xff]
        %v1597 = vld [vmem:[#allocation8 + $0x150] sm:$0xff]
        %v1598 = vld [vmem:[#allocation8 + $0x158] sm:$0xff]
        %v1599 = vld [vmem:[#allocation8 + $0x160] sm:$0xff]
        %v1600 = vld [vmem:[#allocation8 + $0x168] sm:$0xff]
        %v1601 = vld [vmem:[#allocation8 + $0x170] sm:$0xff]
        %v1602 = vld [vmem:[#allocation8 + $0x178] sm:$0xff]
        %v1603 = vld [vmem:[#allocation8 + $0x180] sm:$0xff]
        %v1604 = vld [vmem:[#allocation8 + $0x188] sm:$0xff]
        %v1605 = vld [vmem:[#allocation8 + $0x190] sm:$0xff]
        %v1606 = vld [vmem:[#allocation8 + $0x198] sm:$0xff]
        %v1607 = vld [vmem:[#allocation8 + $0x1a0] sm:$0xff]
        %v1608 = vld [vmem:[#allocation8 + $0x1a8] sm:$0xff]
        %v1609 = vld [vmem:[#allocation8 + $0x1b0] sm:$0xff]
        %v1610 = vld [vmem:[#allocation8 + $0x1b8] sm:$0xff]
        %v1611 = vld [vmem:[#allocation8 + $0x1c0] sm:$0xff]
        %v1612 = vld [vmem:[#allocation8 + $0x1c8] sm:$0xff]
        %v1613 = vld [vmem:[#allocation8 + $0x1d0] sm:$0xff]
        %v1614 = vld [vmem:[#allocation8 + $0x1d8] sm:$0xff]
        %v1615 = vld [vmem:[#allocation8 + $0x1e0] sm:$0xff]
        %v1616 = vld [vmem:[#allocation8 + $0x1e8] sm:$0xff]
        %v1617 = vld [vmem:[#allocation8 + $0x1f0] sm:$0xff]
        %v1618 = vld [vmem:[#allocation8 + $0x1f8] sm:$0xff]
        %v1619 = vld [vmem:[%s4] sm:$0x3]
        %v1621 = vlaneseq
        %v1622 = vshrl.u32 %v1621, 7
        %v1623 = vsub.s32 0, %v1622
        %v1624 = vrot.slane %v1619, %v1623
        %v1625 = vlaneseq
        %v1626 = vshrl.u32 %v1625, 7
        %v1627 = vsub.s32 1, %v1626
        %v1628 = vrot.slane %v1619, %v1627
        %v1695 = vunpack.c.l.b16 %v1555
        %v1696 = vunpack.c.h.b16 %v1555
        %v1697 = vunpack.c.l.b16 %v1556
        %v1698 = vunpack.c.h.b16 %v1556
        %v1699 = vunpack.c.l.b16 %v1557
        %v1700 = vunpack.c.h.b16 %v1557
        %v1701 = vunpack.c.l.b16 %v1558
        %v1702 = vunpack.c.h.b16 %v1558
        %v1703 = vunpack.c.l.b16 %v1559
        %v1704 = vunpack.c.h.b16 %v1559
        %v1705 = vunpack.c.l.b16 %v1560
        %v1706 = vunpack.c.h.b16 %v1560
        %v1707 = vunpack.c.l.b16 %v1561
        %v1708 = vunpack.c.h.b16 %v1561
        %v1709 = vunpack.c.l.b16 %v1562
        %v1710 = vunpack.c.h.b16 %v1562
        %v1711 = vunpack.c.l.b16 %v1563
        %v1712 = vunpack.c.h.b16 %v1563
        %v1713 = vunpack.c.l.b16 %v1564
        %v1714 = vunpack.c.h.b16 %v1564
        %v1715 = vunpack.c.l.b16 %v1565
        %v1716 = vunpack.c.h.b16 %v1565
        %v1717 = vunpack.c.l.b16 %v1566
        %v1718 = vunpack.c.h.b16 %v1566
        %v1719 = vunpack.c.l.b16 %v1567
        %v1720 = vunpack.c.h.b16 %v1567
        %v1721 = vunpack.c.l.b16 %v1568
        %v1722 = vunpack.c.h.b16 %v1568
        %v1723 = vunpack.c.l.b16 %v1569
        %v1724 = vunpack.c.h.b16 %v1569
        %v1725 = vunpack.c.l.b16 %v1570
        %v1726 = vunpack.c.h.b16 %v1570
        %v1727 = vunpack.c.l.b16 %v1571
        %v1728 = vunpack.c.h.b16 %v1571
        %v1729 = vunpack.c.l.b16 %v1572
        %v1730 = vunpack.c.h.b16 %v1572
        %v1731 = vunpack.c.l.b16 %v1573
        %v1732 = vunpack.c.h.b16 %v1573
        %v1733 = vunpack.c.l.b16 %v1574
        %v1734 = vunpack.c.h.b16 %v1574
        %v1735 = vunpack.c.l.b16 %v1575
        %v1736 = vunpack.c.h.b16 %v1575
        %v1737 = vunpack.c.l.b16 %v1576
        %v1738 = vunpack.c.h.b16 %v1576
        %v1739 = vunpack.c.l.b16 %v1577
        %v1740 = vunpack.c.h.b16 %v1577
        %v1741 = vunpack.c.l.b16 %v1578
        %v1742 = vunpack.c.h.b16 %v1578
        %v1743 = vunpack.c.l.b16 %v1579
        %v1744 = vunpack.c.h.b16 %v1579
        %v1745 = vunpack.c.l.b16 %v1580
        %v1746 = vunpack.c.h.b16 %v1580
        %v1747 = vunpack.c.l.b16 %v1581
        %v1748 = vunpack.c.h.b16 %v1581
        %v1749 = vunpack.c.l.b16 %v1582
        %v1750 = vunpack.c.h.b16 %v1582
        %v1751 = vunpack.c.l.b16 %v1583
        %v1752 = vunpack.c.h.b16 %v1583
        %v1753 = vunpack.c.l.b16 %v1584
        %v1754 = vunpack.c.h.b16 %v1584
        %v1755 = vunpack.c.l.b16 %v1585
        %v1756 = vunpack.c.h.b16 %v1585
        %v1757 = vunpack.c.l.b16 %v1586
        %v1758 = vunpack.c.h.b16 %v1586
        %v1759 = vunpack.c.l.b16 %v1587
        %v1760 = vunpack.c.h.b16 %v1587
        %v1761 = vunpack.c.l.b16 %v1588
        %v1762 = vunpack.c.h.b16 %v1588
        %v1763 = vunpack.c.l.b16 %v1589
        %v1764 = vunpack.c.h.b16 %v1589
        %v1765 = vunpack.c.l.b16 %v1590
        %v1766 = vunpack.c.h.b16 %v1590
        %v1767 = vunpack.c.l.b16 %v1591
        %v1768 = vunpack.c.h.b16 %v1591
        %v1769 = vunpack.c.l.b16 %v1592
        %v1770 = vunpack.c.h.b16 %v1592
        %v1771 = vunpack.c.l.b16 %v1593
        %v1772 = vunpack.c.h.b16 %v1593
        %v1773 = vunpack.c.l.b16 %v1594
        %v1774 = vunpack.c.h.b16 %v1594
        %v1775 = vunpack.c.l.b16 %v1595
        %v1776 = vunpack.c.h.b16 %v1595
        %v1777 = vunpack.c.l.b16 %v1596
        %v1778 = vunpack.c.h.b16 %v1596
        %v1779 = vunpack.c.l.b16 %v1597
        %v1780 = vunpack.c.h.b16 %v1597
        %v1781 = vunpack.c.l.b16 %v1598
        %v1782 = vunpack.c.h.b16 %v1598
        %v1783 = vunpack.c.l.b16 %v1599
        %v1784 = vunpack.c.h.b16 %v1599
        %v1785 = vunpack.c.l.b16 %v1600
        %v1786 = vunpack.c.h.b16 %v1600
        %v1787 = vunpack.c.l.b16 %v1601
        %v1788 = vunpack.c.h.b16 %v1601
        %v1789 = vunpack.c.l.b16 %v1602
        %v1790 = vunpack.c.h.b16 %v1602
        %v1791 = vunpack.c.l.b16 %v1603
        %v1792 = vunpack.c.h.b16 %v1603
        %v1793 = vunpack.c.l.b16 %v1604
        %v1794 = vunpack.c.h.b16 %v1604
        %v1795 = vunpack.c.l.b16 %v1605
        %v1796 = vunpack.c.h.b16 %v1605
        %v1797 = vunpack.c.l.b16 %v1606
        %v1798 = vunpack.c.h.b16 %v1606
        %v1799 = vunpack.c.l.b16 %v1607
        %v1800 = vunpack.c.h.b16 %v1607
        %v1801 = vunpack.c.l.b16 %v1608
        %v1802 = vunpack.c.h.b16 %v1608
        %v1803 = vunpack.c.l.b16 %v1609
        %v1804 = vunpack.c.h.b16 %v1609
        %v1805 = vunpack.c.l.b16 %v1610
        %v1806 = vunpack.c.h.b16 %v1610
        %v1807 = vunpack.c.l.b16 %v1611
        %v1808 = vunpack.c.h.b16 %v1611
        %v1809 = vunpack.c.l.b16 %v1612
        %v1810 = vunpack.c.h.b16 %v1612
        %v1811 = vunpack.c.l.b16 %v1613
        %v1812 = vunpack.c.h.b16 %v1613
        %v1813 = vunpack.c.l.b16 %v1614
        %v1814 = vunpack.c.h.b16 %v1614
        %v1815 = vunpack.c.l.b16 %v1615
        %v1816 = vunpack.c.h.b16 %v1615
        %v1817 = vunpack.c.l.b16 %v1616
        %v1818 = vunpack.c.h.b16 %v1616
        %v1819 = vunpack.c.l.b16 %v1617
        %v1820 = vunpack.c.h.b16 %v1617
        %v1821 = vunpack.c.l.b16 %v1618
        %v1822 = vunpack.c.h.b16 %v1618
        %v1823 = vpack.c.b16 %v1697, %v1695
        %v1824 = vpack.c.b16 %v1698, %v1696
        %v1825 = vpack.c.b16 %v1701, %v1699
        %v1826 = vpack.c.b16 %v1702, %v1700
        %v1827 = vpack.c.b16 %v1705, %v1703
        %v1828 = vpack.c.b16 %v1706, %v1704
        %v1829 = vpack.c.b16 %v1709, %v1707
        %v1830 = vpack.c.b16 %v1710, %v1708
        %v1831 = vpack.c.b16 %v1713, %v1711
        %v1832 = vpack.c.b16 %v1714, %v1712
        %v1833 = vpack.c.b16 %v1717, %v1715
        %v1834 = vpack.c.b16 %v1718, %v1716
        %v1835 = vpack.c.b16 %v1721, %v1719
        %v1836 = vpack.c.b16 %v1722, %v1720
        %v1837 = vpack.c.b16 %v1725, %v1723
        %v1838 = vpack.c.b16 %v1726, %v1724
        %v1839 = vpack.c.b16 %v1729, %v1727
        %v1840 = vpack.c.b16 %v1730, %v1728
        %v1841 = vpack.c.b16 %v1733, %v1731
        %v1842 = vpack.c.b16 %v1734, %v1732
        %v1843 = vpack.c.b16 %v1737, %v1735
        %v1844 = vpack.c.b16 %v1738, %v1736
        %v1845 = vpack.c.b16 %v1741, %v1739
        %v1846 = vpack.c.b16 %v1742, %v1740
        %v1847 = vpack.c.b16 %v1745, %v1743
        %v1848 = vpack.c.b16 %v1746, %v1744
        %v1849 = vpack.c.b16 %v1749, %v1747
        %v1850 = vpack.c.b16 %v1750, %v1748
        %v1851 = vpack.c.b16 %v1753, %v1751
        %v1852 = vpack.c.b16 %v1754, %v1752
        %v1853 = vpack.c.b16 %v1757, %v1755
        %v1854 = vpack.c.b16 %v1758, %v1756
        %v1855 = vpack.c.b16 %v1761, %v1759
        %v1856 = vpack.c.b16 %v1762, %v1760
        %v1857 = vpack.c.b16 %v1765, %v1763
        %v1858 = vpack.c.b16 %v1766, %v1764
        %v1859 = vpack.c.b16 %v1769, %v1767
        %v1860 = vpack.c.b16 %v1770, %v1768
        %v1861 = vpack.c.b16 %v1773, %v1771
        %v1862 = vpack.c.b16 %v1774, %v1772
        %v1863 = vpack.c.b16 %v1777, %v1775
        %v1864 = vpack.c.b16 %v1778, %v1776
        %v1865 = vpack.c.b16 %v1781, %v1779
        %v1866 = vpack.c.b16 %v1782, %v1780
        %v1867 = vpack.c.b16 %v1785, %v1783
        %v1868 = vpack.c.b16 %v1786, %v1784
        %v1869 = vpack.c.b16 %v1789, %v1787
        %v1870 = vpack.c.b16 %v1790, %v1788
        %v1871 = vpack.c.b16 %v1793, %v1791
        %v1872 = vpack.c.b16 %v1794, %v1792
        %v1873 = vpack.c.b16 %v1797, %v1795
        %v1874 = vpack.c.b16 %v1798, %v1796
        %v1875 = vpack.c.b16 %v1801, %v1799
        %v1876 = vpack.c.b16 %v1802, %v1800
        %v1877 = vpack.c.b16 %v1805, %v1803
        %v1878 = vpack.c.b16 %v1806, %v1804
        %v1879 = vpack.c.b16 %v1809, %v1807
        %v1880 = vpack.c.b16 %v1810, %v1808
        %v1881 = vpack.c.b16 %v1813, %v1811
        %v1882 = vpack.c.b16 %v1814, %v1812
        %v1883 = vpack.c.b16 %v1817, %v1815
        %v1884 = vpack.c.b16 %v1818, %v1816
        %v1885 = vpack.c.b16 %v1821, %v1819
        %v1886 = vpack.c.b16 %v1822, %v1820
        %1951 = vmatprep.subr.bf16.mxu0 %v1838
        %1952 = vmatpush1.bf16.msra.mxu0 %v1837
        %1953 = vmatprep.subr.bf16.mxu0 %v1836
        %1954 = vmatpush1.bf16.msra.mxu0 %v1835
        %1955 = vmatprep.subr.bf16.mxu0 %v1834
        %1956 = vmatpush1.bf16.msra.mxu0 %v1833
        %1957 = vmatprep.subr.bf16.mxu0 %v1832
        %1958 = vmatpush1.bf16.msra.mxu0 %v1831
        %1959 = vmatprep.subr.bf16.mxu0 %v1830
        %1960 = vmatpush1.bf16.msra.mxu0 %v1829
        %1961 = vmatprep.subr.bf16.mxu0 %v1828
        %1962 = vmatpush1.bf16.msra.mxu0 %v1827
        %1963 = vmatprep.subr.bf16.mxu0 %v1826
        %1964 = vmatpush1.bf16.msra.mxu0 %v1825
        %1965 = vmatprep.subr.bf16.mxu0 %v1824
        %1966 = vmatpush1.bf16.msra.mxu0 %v1823
        %1967 = vmatprep.subr.bf16.mxu0 %v1854
        %1968 = vmatpush2.bf16.msra.mxu0 %v1853
        %1969 = vmatprep.subr.bf16.mxu0 %v1852
        %1970 = vmatpush2.bf16.msra.mxu0 %v1851
        %1971 = vmatprep.subr.bf16.mxu0 %v1850
        %1972 = vmatpush2.bf16.msra.mxu0 %v1849
        %1973 = vmatprep.subr.bf16.mxu0 %v1848
        %1974 = vmatpush2.bf16.msra.mxu0 %v1847
        %1975 = vmatprep.subr.bf16.mxu0 %v1846
        %1976 = vmatpush2.bf16.msra.mxu0 %v1845
        %1977 = vmatprep.subr.bf16.mxu0 %v1844
        %1978 = vmatpush2.bf16.msra.mxu0 %v1843
        %1979 = vmatprep.subr.bf16.mxu0 %v1842
        %1980 = vmatpush2.bf16.msra.mxu0 %v1841
        %1981 = vmatprep.subr.bf16.mxu0 %v1840
        %1982 = vmatpush2.bf16.msra.mxu0 %v1839
        %1983 = vmatprep.mubr.bf16.mxu0 %v1552
        %1984 = vmatmul.mubr.bf16.gmra.mxu0 %v1551
        %v1985 = vpop.f32.mrf.mxu0
        %v1986 = vadd.f32 %v1624, %v1985
        %v1987 = vpop.f32.mrf.mxu0
        %v1988 = vadd.f32 %v1628, %v1987
        %v1989 = vpop.f32.mrf.mxu0
        %v1990 = vpop.f32.mrf.mxu0
        %1991 = vdwg.mxu0
        %1992 = vmatprep.subr.bf16.mxu0 %v1870
        %1993 = vmatpush1.bf16.msra.mxu0 %v1869
        %1994 = vmatprep.subr.bf16.mxu0 %v1868
        %1995 = vmatpush1.bf16.msra.mxu0 %v1867
        %1996 = vmatprep.subr.bf16.mxu0 %v1866
        %1997 = vmatpush1.bf16.msra.mxu0 %v1865
        %1998 = vmatprep.subr.bf16.mxu0 %v1864
        %1999 = vmatpush1.bf16.msra.mxu0 %v1863
        %2000 = vmatprep.subr.bf16.mxu0 %v1862
        %2001 = vmatpush1.bf16.msra.mxu0 %v1861
        %2002 = vmatprep.subr.bf16.mxu0 %v1860
        %2003 = vmatpush1.bf16.msra.mxu0 %v1859
        %2004 = vmatprep.subr.bf16.mxu0 %v1858
        %2005 = vmatpush1.bf16.msra.mxu0 %v1857
        %2006 = vmatprep.subr.bf16.mxu0 %v1856
        %2007 = vmatpush1.bf16.msra.mxu0 %v1855
        %2008 = vmatprep.subr.bf16.mxu0 %v1886
        %2009 = vmatpush2.bf16.msra.mxu0 %v1885
        %2010 = vmatprep.subr.bf16.mxu0 %v1884
        %2011 = vmatpush2.bf16.msra.mxu0 %v1883
        %2012 = vmatprep.subr.bf16.mxu0 %v1882
        %2013 = vmatpush2.bf16.msra.mxu0 %v1881
        %2014 = vmatprep.subr.bf16.mxu0 %v1880
        %2015 = vmatpush2.bf16.msra.mxu0 %v1879
        %2016 = vmatprep.subr.bf16.mxu0 %v1878
        %2017 = vmatpush2.bf16.msra.mxu0 %v1877
        %2018 = vmatprep.subr.bf16.mxu0 %v1876
        %2019 = vmatpush2.bf16.msra.mxu0 %v1875
        %2020 = vmatprep.subr.bf16.mxu0 %v1874
        %2021 = vmatpush2.bf16.msra.mxu0 %v1873
        %2022 = vmatprep.subr.bf16.mxu0 %v1872
        %2023 = vmatpush2.bf16.msra.mxu0 %v1871
        %2024 = vmatprep.mubr.bf16.mxu0 %v1554
        %2025 = vmatmul.mubr.bf16.gmra.mxu0 %v1553
        %v2026 = vpop.f32.mrf.mxu0
        %v2027 = vadd.f32 %v1986, %v2026
        %v2028 = vpop.f32.mrf.mxu0
        %v2029 = vadd.f32 %v1988, %v2028
        %v2030 = vpop.f32.mrf.mxu0
        %v2031 = vpop.f32.mrf.mxu0
        %2032 = vdwg.mxu0
        %v2033 = vmax.f32 %v2027, 0.0
        %v2034 = vmax.f32 %v2029, 0.0
        %v2035 = vpack.c.bf16 %v2033, %v2033
        %v2036 = vpack.c.bf16 %v2034, %v2034
        %v2037 = vld [vmem:[#allocation10] sm:$0xf]
        %v2038 = vld [vmem:[#allocation10 + $0x4] sm:$0xf]
        %v2039 = vld [vmem:[#allocation10 + $0x8] sm:$0xf]
        %v2040 = vld [vmem:[#allocation10 + $0xc] sm:$0xf]
        %v2041 = vld [vmem:[#allocation10 + $0x10] sm:$0xf]
        %v2042 = vld [vmem:[#allocation10 + $0x14] sm:$0xf]
        %v2043 = vld [vmem:[#allocation10 + $0x18] sm:$0xf]
        %v2044 = vld [vmem:[#allocation10 + $0x1c] sm:$0xf]
        %v2045 = vld [vmem:[#allocation10 + $0x20] sm:$0xf]
        %v2046 = vld [vmem:[#allocation10 + $0x24] sm:$0xf]
        %v2047 = vld [vmem:[#allocation10 + $0x28] sm:$0xf]
        %v2048 = vld [vmem:[#allocation10 + $0x2c] sm:$0xf]
        %v2049 = vld [vmem:[#allocation10 + $0x30] sm:$0xf]
        %v2050 = vld [vmem:[#allocation10 + $0x34] sm:$0xf]
        %v2051 = vld [vmem:[#allocation10 + $0x38] sm:$0xf]
        %v2052 = vld [vmem:[#allocation10 + $0x3c] sm:$0xf]
        %v2053 = vld [vmem:[#allocation10 + $0x40] sm:$0xf]
        %v2054 = vld [vmem:[#allocation10 + $0x44] sm:$0xf]
        %v2055 = vld [vmem:[#allocation10 + $0x48] sm:$0xf]
        %v2056 = vld [vmem:[#allocation10 + $0x4c] sm:$0xf]
        %v2057 = vld [vmem:[#allocation10 + $0x50] sm:$0xf]
        %v2058 = vld [vmem:[#allocation10 + $0x54] sm:$0xf]
        %v2059 = vld [vmem:[#allocation10 + $0x58] sm:$0xf]
        %v2060 = vld [vmem:[#allocation10 + $0x5c] sm:$0xf]
        %v2061 = vld [vmem:[#allocation10 + $0x60] sm:$0xf]
        %v2062 = vld [vmem:[#allocation10 + $0x64] sm:$0xf]
        %v2063 = vld [vmem:[#allocation10 + $0x68] sm:$0xf]
        %v2064 = vld [vmem:[#allocation10 + $0x6c] sm:$0xf]
        %v2065 = vld [vmem:[#allocation10 + $0x70] sm:$0xf]
        %v2066 = vld [vmem:[#allocation10 + $0x74] sm:$0xf]
        %v2067 = vld [vmem:[#allocation10 + $0x78] sm:$0xf]
        %v2068 = vld [vmem:[#allocation10 + $0x7c] sm:$0xf]
        %v2069 = vld [vmem:[%s6] sm:$0x1]
        %v2071 = vlaneseq
        %v2072 = vshrl.u32 %v2071, 7
        %v2073 = vsub.s32 0, %v2072
        %v2074 = vrot.slane %v2069, %v2073
        %v2108 = vunpack.c.l.b16 %v2037
        %v2109 = vunpack.c.l.b16 %v2038
        %v2110 = vunpack.c.l.b16 %v2039
        %v2111 = vunpack.c.l.b16 %v2040
        %v2112 = vunpack.c.l.b16 %v2041
        %v2113 = vunpack.c.l.b16 %v2042
        %v2114 = vunpack.c.l.b16 %v2043
        %v2115 = vunpack.c.l.b16 %v2044
        %v2116 = vunpack.c.l.b16 %v2045
        %v2117 = vunpack.c.l.b16 %v2046
        %v2118 = vunpack.c.l.b16 %v2047
        %v2119 = vunpack.c.l.b16 %v2048
        %v2120 = vunpack.c.l.b16 %v2049
        %v2121 = vunpack.c.l.b16 %v2050
        %v2122 = vunpack.c.l.b16 %v2051
        %v2123 = vunpack.c.l.b16 %v2052
        %v2124 = vunpack.c.l.b16 %v2053
        %v2125 = vunpack.c.l.b16 %v2054
        %v2126 = vunpack.c.l.b16 %v2055
        %v2127 = vunpack.c.l.b16 %v2056
        %v2128 = vunpack.c.l.b16 %v2057
        %v2129 = vunpack.c.l.b16 %v2058
        %v2130 = vunpack.c.l.b16 %v2059
        %v2131 = vunpack.c.l.b16 %v2060
        %v2132 = vunpack.c.l.b16 %v2061
        %v2133 = vunpack.c.l.b16 %v2062
        %v2134 = vunpack.c.l.b16 %v2063
        %v2135 = vunpack.c.l.b16 %v2064
        %v2136 = vunpack.c.l.b16 %v2065
        %v2137 = vunpack.c.l.b16 %v2066
        %v2138 = vunpack.c.l.b16 %v2067
        %v2139 = vunpack.c.l.b16 %v2068
        %v2140 = vpack.c.b16 %v2109, %v2108
        %v2141 = vpack.c.b16 %v2111, %v2110
        %v2142 = vpack.c.b16 %v2113, %v2112
        %v2143 = vpack.c.b16 %v2115, %v2114
        %v2144 = vpack.c.b16 %v2117, %v2116
        %v2145 = vpack.c.b16 %v2119, %v2118
        %v2146 = vpack.c.b16 %v2121, %v2120
        %v2147 = vpack.c.b16 %v2123, %v2122
        %v2148 = vpack.c.b16 %v2125, %v2124
        %v2149 = vpack.c.b16 %v2127, %v2126
        %v2150 = vpack.c.b16 %v2129, %v2128
        %v2151 = vpack.c.b16 %v2131, %v2130
        %v2152 = vpack.c.b16 %v2133, %v2132
        %v2153 = vpack.c.b16 %v2135, %v2134
        %v2154 = vpack.c.b16 %v2137, %v2136
        %v2155 = vpack.c.b16 %v2139, %v2138
        %2172 = vmatprep.subr.bf16.mxu0 0
        %2173 = vmatpush1.bf16.msra.mxu0 %v2147
        %2174 = vmatprep.subr.bf16.mxu0 0
        %2175 = vmatpush1.bf16.msra.mxu0 %v2146
        %2176 = vmatprep.subr.bf16.mxu0 0
        %2177 = vmatpush1.bf16.msra.mxu0 %v2145
        %2178 = vmatprep.subr.bf16.mxu0 0
        %2179 = vmatpush1.bf16.msra.mxu0 %v2144
        %2180 = vmatprep.subr.bf16.mxu0 0
        %2181 = vmatpush1.bf16.msra.mxu0 %v2143
        %2182 = vmatprep.subr.bf16.mxu0 0
        %2183 = vmatpush1.bf16.msra.mxu0 %v2142
        %2184 = vmatprep.subr.bf16.mxu0 0
        %2185 = vmatpush1.bf16.msra.mxu0 %v2141
        %2186 = vmatprep.subr.bf16.mxu0 0
        %2187 = vmatpush1.bf16.msra.mxu0 %v2140
        %2188 = vmatprep.subr.bf16.mxu0 0
        %2189 = vmatpush2.bf16.msra.mxu0 %v2155
        %2190 = vmatprep.subr.bf16.mxu0 0
        %2191 = vmatpush2.bf16.msra.mxu0 %v2154
        %2192 = vmatprep.subr.bf16.mxu0 0
        %2193 = vmatpush2.bf16.msra.mxu0 %v2153
        %2194 = vmatprep.subr.bf16.mxu0 0
        %2195 = vmatpush2.bf16.msra.mxu0 %v2152
        %2196 = vmatprep.subr.bf16.mxu0 0
        %2197 = vmatpush2.bf16.msra.mxu0 %v2151
        %2198 = vmatprep.subr.bf16.mxu0 0
        %2199 = vmatpush2.bf16.msra.mxu0 %v2150
        %2200 = vmatprep.subr.bf16.mxu0 0
        %2201 = vmatpush2.bf16.msra.mxu0 %v2149
        %2202 = vmatprep.subr.bf16.mxu0 0
        %2203 = vmatpush2.bf16.msra.mxu0 %v2148
        %2204 = vmatprep.mubr.bf16.mxu0 %v2036
        %2205 = vmatmul.mubr.bf16.gmra.mxu0 %v2035
        %v2206 = vpop.f32.mrf.mxu0
        %v2207 = vadd.f32 %v2074, %v2206
        %v2208 = vpop.f32.mrf.mxu0
        %v2209 = vpop.f32.mrf.mxu0
        %v2210 = vpop.f32.mrf.mxu0
        %2211 = vdwg.mxu0
        %2212 = vmax.xlane.f32.xlu0 %v2207
        %v2213 = vpop.xlane.xlu0 %2212
        %v2214 = vsub.f32 %v2207, %v2213
        %v2215 = vmul.f32 %v2214, 1.442695
        %v2216 = vpow.pop %v2215
        %2217 = vadd.xlane.f32.xlu0 %v2216
        %v2218 = vpop.xlane.xlu0 %2217
        %v2219 = vrcp.pop %v2218
        %v2220 = vmul.f32 %v2216, %v2219
        %2221 = vst [vmem:[%s350] sm:$0xff] %v2220
        %s2222 = sand.u32 %s186, 1
        %s2223 = scalar_lea.sflag [#allocation4], %s2222
        %s2224 = sand.u32 %s186, 1
        %s2225 = smul.addr %s2224, 8
        %s2226 = scalar_lea.vmem [#allocation11], %s2225
        // Predicated region
        $region69: #{tpu_custom_call.1} parent=47 // pred_check
          %p2227 = pneg %p196
        $region70: #{tpu_custom_call.1} parent=47 // pred_check_branch
          %2229 = sbr.rel (%p2227) target = $region72
        $region71: #{tpu_custom_call.1} parent=47 // pred_region
          %s2231 = ssub.s32 128, 128
          %2232 = vsyncadd %s2223, %s2231
          %s2233 = smul.addr %s26, 128
          %s2234 = scalar_lea.hbm %s7, %s2233
          %s2236 = sshll.u32 %s2226, 4
          %s2237 = int_to_ptr.vmem [resolvable:$true] %s2236
          %2239 = dma.vmem_to_hbm [thread:$0]  %s2237, 128, %s2234, %s2223
        $region72: #{tpu_custom_call.1} parent=47 // pred_fallthru
          _
      $region48: #{tpu_custom_call.1} parent=5 // pred_fallthru
        _
      %p2240 = scmp.le.s32.totalorder 2, %s21
      // Predicated region
      $region73: #{tpu_custom_call.1} parent=5 // pred_check
        %p2241 = pneg %p2240
      $region74: #{tpu_custom_call.1} parent=5 // pred_check_branch
        %2243 = sbr.rel (%p2241) target = $region76
      $region75: #{tpu_custom_call.1} parent=5 // pred_region
        %s2244 = ssub.s32 %s21, 2
        // Predicated region
        $region77: #{tpu_custom_call.1} parent=75 // pred_check
          %p2245 = pneg %p202
        $region78: #{tpu_custom_call.1} parent=75 // pred_check_branch
          %2247 = sbr.rel (%p2245) target = $region80
        $region79: #{tpu_custom_call.1} parent=75 // pred_region
          %s2248 = sand.u32 %s187, 1
          %s2249 = scalar_lea.sflag [#allocation4], %s2248
          %s2250 = sand.u32 %s187, 1
          %s2251 = smul.addr %s2250, 8
          %s2252 = scalar_lea.vmem [#allocation11], %s2251
          %2253 = dma.done %s2249, 128
        $region80: #{tpu_custom_call.1} parent=75 // pred_fallthru
          _
      $region76: #{tpu_custom_call.1} parent=5 // pred_fallthru
        _
    $region6: #{tpu_custom_call.1} parent=1 // loop_footer
      %s25 = sadd.s32 1, %s21
    $region7: #{tpu_custom_call.1} parent=1 // loop_footer_branch
      %20 = sbr.rel target = $region3
    $region8: #{tpu_custom_call.1} parent=1 // loop_exit
      _
    %2254 = vsyncpa [#allocation3], 1
    %s2255 = scalar_lea.sflag [#allocation3], 1
    %2256 = vsyncpa %s2255, 1
    %2257 = vsyncpa [#allocation6], 1
    %2258 = vsyncpa [#allocation9], 1
    %2259 = vsyncpa [#allocation4], 1
    %s2260 = scalar_lea.sflag [#allocation4], 1
    %2261 = vsyncpa %s2260, 1

</llo_original>
